<compile_context>
chip_gen: v7x
topology: tpu7x:2x2x1
jax: 0.10.0
libtpu: 0.0.40
codegen_flags: <defaults>
</compile_context>

<pallas_src>
import functools

import jax
import jax.numpy as jnp
from jax.experimental import pallas as pl
from jax.experimental.pallas import tpu as pltpu


# --------------------------------------------------------------------------
# Pallas kernel
# --------------------------------------------------------------------------
def _dwconv_kernel(x_ref, w_ref, b_ref, o_ref):
    """Depthwise 3x3 conv, stride 1, 'same' padding, + bias.

    x_ref : (1, H, W, CT)   one image, one channel tile (VMEM)
    w_ref : (9, CT)         taps, row dy*3+dx (fp32)
    b_ref : (1, CT)         bias (fp32)
    o_ref : (1, H, W, CT)
    """
    _, H, W, CT = x_ref.shape
    dtype = x_ref.dtype

    # Hoisted loads: one (9, CT) weight read + one bias read per grid step.
    w = w_ref[...]                      # (9, CT) fp32
    b = b_ref[0]                        # (CT,)   fp32

    # Column-index mask used to zero the wrapped column after a circular roll.
    col = jax.lax.broadcasted_iota(jnp.int32, (W, CT), 0)
    first_col = col == 0
    last_col = col == W - 1
    zero = jnp.zeros((), dtype)
    zrow = jnp.zeros((1, W, CT), dtype)     # single halo row at image borders

    HC = 8  # sublane-aligned output-row chunk: bounds the live fp32 accumulator
    for a in range(0, H, HC):
        hc = min(HC, H - a)
        b_end = a + hc

        # Input rows [a-1, b_end+1) with zero rows at the image border.
        lo = max(a - 1, 0)
        hi = min(b_end + 1, H)
        xm = x_ref[0, lo:hi]                       # major-axis slice, aligned
        if a == 0:
            xm = jnp.concatenate([zrow, xm], axis=0)
        if b_end == H:
            xm = jnp.concatenate([xm, zrow], axis=0)
        # xm has hc + 2 rows; xm[t + dy] is input row (a + t + dy - 1).

        # Column shifts on the XLU (pltpu.roll) + border masking on the VPU:
        # no sublane-misaligned slices, no padded scratch.
        xl = jnp.where(first_col, zero, pltpu.roll(xm, 1, axis=1))        # col j-1
        xr = jnp.where(last_col, zero, pltpu.roll(xm, W - 1, axis=1))     # col j+1

        # 9 statically-unrolled taps; operands stay in the input dtype, the
        # multiply against the fp32 weight promotes, accumulation is fp32.
        acc = (xl[0:hc]     * w[0] + xm[0:hc]     * w[1] + xr[0:hc]     * w[2]
             + xl[1:hc + 1] * w[3] + xm[1:hc + 1] * w[4] + xr[1:hc + 1] * w[5]
             + xl[2:hc + 2] * w[6] + xm[2:hc + 2] * w[7] + xr[2:hc + 2] * w[8])

        o_ref[0, a:b_end] = (acc + b).astype(o_ref.dtype)


# --------------------------------------------------------------------------
# Wrapper
# --------------------------------------------------------------------------
@functools.partial(jax.jit, static_argnums=(3, 4))
def dwconv(x, w9, bias, H, W):
    """x: (B, N=H*W, C) tokens; w9: (9, C) taps [dy*3+dx, c]; bias: (C,).

    w9[dy*3+dx, c] corresponds to PyTorch weight (C,1,3,3) via
    weight.permute(2, 3, 1, 0).reshape(9, C).
    """
    B, N, C = x.shape
    assert N == H * W, "N must equal H * W"

    # Channel tile: largest multiple of 128 dividing C (capped at 512 for the
    # v7x 64-MiB VMEM budget), while keeping >= 2 parallel grid points so both
    # v7x TensorCores get work.
    if C % 128 == 0:
        CT = 128
        for cand in (512, 384, 256):
            if C % cand == 0 and B * (C // cand) >= 2:
                CT = cand
                break
    else:
        CT = C   # TODO(synk): for large C not divisible by 128, pad C instead.

    xi = x.reshape(B, H, W, C)            # NHWC view of tokens; metadata only
    w9 = w9.astype(jnp.float32)
    b2 = bias.astype(jnp.float32).reshape(1, C)

    # in + out tiles double-buffered by the auto-pipeline, plus fp32 temp /
    # spill headroom; capped at v7x's 64-MiB physical VMEM.
    tile_bytes = H * W * CT * x.dtype.itemsize
    vmem_bytes = int(min(64 * 1024 * 1024,
                         max(16 * 1024 * 1024, 10 * tile_bytes)))

    out = pl.pallas_call(
        _dwconv_kernel,
        out_shape=jax.ShapeDtypeStruct((B, H, W, C), x.dtype),
        grid_spec=pltpu.PrefetchScalarGridSpec(
            num_scalar_prefetch=0,
            grid=(B, C // CT),
            in_specs=[
                pl.BlockSpec((1, H, W, CT), lambda b, c: (b, 0, 0, c)),
                pl.BlockSpec((9, CT), lambda b, c: (0, c)),
                pl.BlockSpec((1, CT), lambda b, c: (0, c)),
            ],
            out_specs=pl.BlockSpec((1, H, W, CT), lambda b, c: (b, 0, 0, c)),
        ),
        compiler_params=pltpu.CompilerParams(
            dimension_semantics=("parallel", "parallel"),
            vmem_limit_bytes=vmem_bytes),
    )(xi, w9, b2)

    return out.reshape(B, N, C)


# --------------------------------------------------------------------------
# Pure-JAX reference (same math, same summation order)
# --------------------------------------------------------------------------
def dwconv_ref(x, w9, bias, H, W):
    B, N, C = x.shape
    xi = x.reshape(B, H, W, C).astype(jnp.float32)
    xp = jnp.pad(xi, ((0, 0), (1, 1), (1, 1), (0, 0)))
    acc = jnp.zeros((B, H, W, C), jnp.float32)
    for dy in range(3):
        for dx in range(3):
            acc = acc + xp[:, dy:dy + H, dx:dx + W, :] * w9[dy * 3 + dx]
    acc = acc + bias
    return acc.reshape(B, N, C).astype(x.dtype)


# --------------------------------------------------------------------------
if __name__ == "__main__":
    key = jax.random.PRNGKey(0)
    kx, kw, kb = jax.random.split(key, 3)

    B, H, W, C = 2, 16, 16, 256        # C = 2 lane tiles; CT picked = 256
    N = H * W

    x = jax.random.normal(kx, (B, N, C), jnp.float32)
    w9 = jax.random.normal(kw, (9, C), jnp.float32) / 3.0
    bias = 0.1 * jax.random.normal(kb, (C,), jnp.float32)

    out = jax.block_until_ready(dwconv(x, w9, bias, H, W))
    ref = dwconv_ref(x, w9, bias, H, W)

    assert out.shape == (B, N, C)
    assert bool(jnp.all(jnp.isfinite(out)))
    max_err = float(jnp.max(jnp.abs(out - ref)))
    assert max_err < 1e-4, f"max abs err {max_err}"
    print("KERNEL_OK")
</pallas_src>

<mosaic_0001>
module attributes {stable_mosaic.version = 11 : i64} {
  func.func @_dwconv_kernel(%arg0: i32, %arg1: i32, %arg2: memref<1x16x16x256xf32, #tpu.memory_space<vmem>>, %arg3: memref<9x256xf32, #tpu.memory_space<vmem>>, %arg4: memref<1x256xf32, #tpu.memory_space<vmem>>, %arg5: memref<1x16x16x256xf32, #tpu.memory_space<vmem>>) attributes {dimension_semantics = [#tpu.dimension_semantics<parallel>, #tpu.dimension_semantics<parallel>], iteration_bounds = array<i64: 2, 1>, scalar_prefetch = 0 : i64, scratch_operands = 0 : i64, tpu.core_type = #tpu.core_type<tc>, window_params = [{transform_indices = @transform_0, window_bounds = array<i64: 1, 16, 16, 256>}, {transform_indices = @transform_1, window_bounds = array<i64: 9, 256>}, {transform_indices = @transform_2, window_bounds = array<i64: 1, 256>}, {transform_indices = @transform_3, window_bounds = array<i64: 1, 16, 16, 256>}]} {
    %c0 = arith.constant 0 : index
    %c0_0 = arith.constant 0 : index
    %0 = vector.load %arg3[%c0, %c0_0] : memref<9x256xf32, #tpu.memory_space<vmem>>, vector<9x256xf32>
    %c0_1 = arith.constant 0 : index
    %c0_2 = arith.constant 0 : index
    %1 = vector.load %arg4[%c0_1, %c0_2] : memref<1x256xf32, #tpu.memory_space<vmem>>, vector<1x256xf32>
    %2 = vector.shape_cast %1 : vector<1x256xf32> to vector<256xf32>
    %3 = tpu.iota {dimensions = array<i32: 0>} : vector<16x256xi32>
    %c0_i32 = arith.constant 0 : i32
    %4 = vector.broadcast %c0_i32 : i32 to vector<16x256xi32>
    %5 = arith.cmpi eq, %3, %4 : vector<16x256xi32>
    %c15_i32 = arith.constant 15 : i32
    %6 = vector.broadcast %c15_i32 : i32 to vector<16x256xi32>
    %7 = arith.cmpi eq, %3, %6 : vector<16x256xi32>
    %cst = arith.constant 0.000000e+00 : f32
    %8 = vector.broadcast %cst : f32 to vector<1x16x256xf32>
    %c0_3 = arith.constant 0 : index
    %c0_4 = arith.constant 0 : index
    %c0_5 = arith.constant 0 : index
    %c0_6 = arith.constant 0 : index
    %9 = vector.load %arg2[%c0_3, %c0_4, %c0_5, %c0_6] : memref<1x16x16x256xf32, #tpu.memory_space<vmem>>, vector<1x9x16x256xf32>
    %10 = vector.shape_cast %9 : vector<1x9x16x256xf32> to vector<9x16x256xf32>
    %11 = tpu.concatenate %8, %10 in 0 : vector<1x16x256xf32>, vector<9x16x256xf32> -> vector<10x16x256xf32>
    %c1_i32 = arith.constant 1 : i32
    %12 = tpu.dynamic_rotate %11 by %c1_i32 dim 1 : vector<10x16x256xf32>, i32 -> vector<10x16x256xf32>
    %cst_7 = arith.constant 0.000000e+00 : f32
    %13 = vector.shape_cast %5 : vector<16x256xi1> to vector<1x16x256xi1>
    %14 = vector.broadcast %13 : vector<1x16x256xi1> to vector<10x16x256xi1>
    %15 = vector.broadcast %cst_7 : f32 to vector<10x16x256xf32>
    %16 = arith.select %14, %15, %12 : vector<10x16x256xi1>, vector<10x16x256xf32>
    %c15_i32_8 = arith.constant 15 : i32
    %17 = tpu.dynamic_rotate %11 by %c15_i32_8 dim 1 : vector<10x16x256xf32>, i32 -> vector<10x16x256xf32>
    %cst_9 = arith.constant 0.000000e+00 : f32
    %18 = vector.shape_cast %7 : vector<16x256xi1> to vector<1x16x256xi1>
    %19 = vector.broadcast %18 : vector<1x16x256xi1> to vector<10x16x256xi1>
    %20 = vector.broadcast %cst_9 : f32 to vector<10x16x256xf32>
    %21 = arith.select %19, %20, %17 : vector<10x16x256xi1>, vector<10x16x256xf32>
    %22 = vector.extract_strided_slice %16 {offsets = [0, 0, 0], sizes = [8, 16, 256], strides = [1, 1, 1]} : vector<10x16x256xf32> to vector<8x16x256xf32>
    %23 = vector.extract_strided_slice %0 {offsets = [0, 0], sizes = [1, 256], strides = [1, 1]} : vector<9x256xf32> to vector<1x256xf32>
    %24 = vector.shape_cast %23 : vector<1x256xf32> to vector<256xf32>
    %25 = vector.shape_cast %24 : vector<256xf32> to vector<1x1x256xf32>
    %26 = vector.broadcast %25 : vector<1x1x256xf32> to vector<8x16x256xf32>
    %27 = arith.mulf %22, %26 : vector<8x16x256xf32>
    %28 = vector.extract_strided_slice %11 {offsets = [0, 0, 0], sizes = [8, 16, 256], strides = [1, 1, 1]} : vector<10x16x256xf32> to vector<8x16x256xf32>
    %29 = vector.extract_strided_slice %0 {offsets = [1, 0], sizes = [1, 256], strides = [1, 1]} : vector<9x256xf32> to vector<1x256xf32>
    %30 = vector.shape_cast %29 : vector<1x256xf32> to vector<256xf32>
    %31 = vector.shape_cast %30 : vector<256xf32> to vector<1x1x256xf32>
    %32 = vector.broadcast %31 : vector<1x1x256xf32> to vector<8x16x256xf32>
    %33 = arith.mulf %28, %32 : vector<8x16x256xf32>
    %34 = arith.addf %27, %33 : vector<8x16x256xf32>
    %35 = vector.extract_strided_slice %21 {offsets = [0, 0, 0], sizes = [8, 16, 256], strides = [1, 1, 1]} : vector<10x16x256xf32> to vector<8x16x256xf32>
    %36 = vector.extract_strided_slice %0 {offsets = [2, 0], sizes = [1, 256], strides = [1, 1]} : vector<9x256xf32> to vector<1x256xf32>
    %37 = vector.shape_cast %36 : vector<1x256xf32> to vector<256xf32>
    %38 = vector.shape_cast %37 : vector<256xf32> to vector<1x1x256xf32>
    %39 = vector.broadcast %38 : vector<1x1x256xf32> to vector<8x16x256xf32>
    %40 = arith.mulf %35, %39 : vector<8x16x256xf32>
    %41 = arith.addf %34, %40 : vector<8x16x256xf32>
    %42 = vector.extract_strided_slice %16 {offsets = [1, 0, 0], sizes = [8, 16, 256], strides = [1, 1, 1]} : vector<10x16x256xf32> to vector<8x16x256xf32>
    %43 = vector.extract_strided_slice %0 {offsets = [3, 0], sizes = [1, 256], strides = [1, 1]} : vector<9x256xf32> to vector<1x256xf32>
    %44 = vector.shape_cast %43 : vector<1x256xf32> to vector<256xf32>
    %45 = vector.shape_cast %44 : vector<256xf32> to vector<1x1x256xf32>
    %46 = vector.broadcast %45 : vector<1x1x256xf32> to vector<8x16x256xf32>
    %47 = arith.mulf %42, %46 : vector<8x16x256xf32>
    %48 = arith.addf %41, %47 : vector<8x16x256xf32>
    %49 = vector.extract_strided_slice %11 {offsets = [1, 0, 0], sizes = [8, 16, 256], strides = [1, 1, 1]} : vector<10x16x256xf32> to vector<8x16x256xf32>
    %50 = vector.extract_strided_slice %0 {offsets = [4, 0], sizes = [1, 256], strides = [1, 1]} : vector<9x256xf32> to vector<1x256xf32>
    %51 = vector.shape_cast %50 : vector<1x256xf32> to vector<256xf32>
    %52 = vector.shape_cast %51 : vector<256xf32> to vector<1x1x256xf32>
    %53 = vector.broadcast %52 : vector<1x1x256xf32> to vector<8x16x256xf32>
    %54 = arith.mulf %49, %53 : vector<8x16x256xf32>
    %55 = arith.addf %48, %54 : vector<8x16x256xf32>
    %56 = vector.extract_strided_slice %21 {offsets = [1, 0, 0], sizes = [8, 16, 256], strides = [1, 1, 1]} : vector<10x16x256xf32> to vector<8x16x256xf32>
    %57 = vector.extract_strided_slice %0 {offsets = [5, 0], sizes = [1, 256], strides = [1, 1]} : vector<9x256xf32> to vector<1x256xf32>
    %58 = vector.shape_cast %57 : vector<1x256xf32> to vector<256xf32>
    %59 = vector.shape_cast %58 : vector<256xf32> to vector<1x1x256xf32>
    %60 = vector.broadcast %59 : vector<1x1x256xf32> to vector<8x16x256xf32>
    %61 = arith.mulf %56, %60 : vector<8x16x256xf32>
    %62 = arith.addf %55, %61 : vector<8x16x256xf32>
    %63 = vector.extract_strided_slice %16 {offsets = [2, 0, 0], sizes = [8, 16, 256], strides = [1, 1, 1]} : vector<10x16x256xf32> to vector<8x16x256xf32>
    %64 = vector.extract_strided_slice %0 {offsets = [6, 0], sizes = [1, 256], strides = [1, 1]} : vector<9x256xf32> to vector<1x256xf32>
    %65 = vector.shape_cast %64 : vector<1x256xf32> to vector<256xf32>
    %66 = vector.shape_cast %65 : vector<256xf32> to vector<1x1x256xf32>
    %67 = vector.broadcast %66 : vector<1x1x256xf32> to vector<8x16x256xf32>
    %68 = arith.mulf %63, %67 : vector<8x16x256xf32>
    %69 = arith.addf %62, %68 : vector<8x16x256xf32>
    %70 = vector.extract_strided_slice %11 {offsets = [2, 0, 0], sizes = [8, 16, 256], strides = [1, 1, 1]} : vector<10x16x256xf32> to vector<8x16x256xf32>
    %71 = vector.extract_strided_slice %0 {offsets = [7, 0], sizes = [1, 256], strides = [1, 1]} : vector<9x256xf32> to vector<1x256xf32>
    %72 = vector.shape_cast %71 : vector<1x256xf32> to vector<256xf32>
    %73 = vector.shape_cast %72 : vector<256xf32> to vector<1x1x256xf32>
    %74 = vector.broadcast %73 : vector<1x1x256xf32> to vector<8x16x256xf32>
    %75 = arith.mulf %70, %74 : vector<8x16x256xf32>
    %76 = arith.addf %69, %75 : vector<8x16x256xf32>
    %77 = vector.extract_strided_slice %21 {offsets = [2, 0, 0], sizes = [8, 16, 256], strides = [1, 1, 1]} : vector<10x16x256xf32> to vector<8x16x256xf32>
    %78 = vector.extract_strided_slice %0 {offsets = [8, 0], sizes = [1, 256], strides = [1, 1]} : vector<9x256xf32> to vector<1x256xf32>
    %79 = vector.shape_cast %78 : vector<1x256xf32> to vector<256xf32>
    %80 = vector.shape_cast %79 : vector<256xf32> to vector<1x1x256xf32>
    %81 = vector.broadcast %80 : vector<1x1x256xf32> to vector<8x16x256xf32>
    %82 = arith.mulf %77, %81 : vector<8x16x256xf32>
    %83 = arith.addf %76, %82 : vector<8x16x256xf32>
    %84 = vector.shape_cast %2 : vector<256xf32> to vector<1x1x256xf32>
    %85 = vector.broadcast %84 : vector<1x1x256xf32> to vector<8x16x256xf32>
    %86 = arith.addf %83, %85 : vector<8x16x256xf32>
    %c0_10 = arith.constant 0 : index
    %c0_11 = arith.constant 0 : index
    %c0_12 = arith.constant 0 : index
    %c0_13 = arith.constant 0 : index
    %87 = vector.load %arg5[%c0_10, %c0_11, %c0_12, %c0_13] : memref<1x16x16x256xf32, #tpu.memory_space<vmem>>, vector<1x8x16x256xf32>
    %88 = vector.shape_cast %87 : vector<1x8x16x256xf32> to vector<8x16x256xf32>
    %89 = vector.shape_cast %86 : vector<8x16x256xf32> to vector<1x8x16x256xf32>
    tpu.vector_store %arg5[%c0_10, %c0_11, %c0_12, %c0_13], %89 {strides = array<i32>} : memref<1x16x16x256xf32, #tpu.memory_space<vmem>>, vector<1x8x16x256xf32>,
    %c0_14 = arith.constant 0 : index
    %c7 = arith.constant 7 : index
    %c0_15 = arith.constant 0 : index
    %c0_16 = arith.constant 0 : index
    %90 = vector.load %arg2[%c0_14, %c7, %c0_15, %c0_16] : memref<1x16x16x256xf32, #tpu.memory_space<vmem>>, vector<1x9x16x256xf32>
    %91 = vector.shape_cast %90 : vector<1x9x16x256xf32> to vector<9x16x256xf32>
    %92 = tpu.concatenate %91, %8 in 0 : vector<9x16x256xf32>, vector<1x16x256xf32> -> vector<10x16x256xf32>
    %c1_i32_17 = arith.constant 1 : i32
    %93 = tpu.dynamic_rotate %92 by %c1_i32_17 dim 1 : vector<10x16x256xf32>, i32 -> vector<10x16x256xf32>
    %cst_18 = arith.constant 0.000000e+00 : f32
    %94 = vector.shape_cast %5 : vector<16x256xi1> to vector<1x16x256xi1>
    %95 = vector.broadcast %94 : vector<1x16x256xi1> to vector<10x16x256xi1>
    %96 = vector.broadcast %cst_18 : f32 to vector<10x16x256xf32>
    %97 = arith.select %95, %96, %93 : vector<10x16x256xi1>, vector<10x16x256xf32>
    %c15_i32_19 = arith.constant 15 : i32
    %98 = tpu.dynamic_rotate %92 by %c15_i32_19 dim 1 : vector<10x16x256xf32>, i32 -> vector<10x16x256xf32>
    %cst_20 = arith.constant 0.000000e+00 : f32
    %99 = vector.shape_cast %7 : vector<16x256xi1> to vector<1x16x256xi1>
    %100 = vector.broadcast %99 : vector<1x16x256xi1> to vector<10x16x256xi1>
    %101 = vector.broadcast %cst_20 : f32 to vector<10x16x256xf32>
    %102 = arith.select %100, %101, %98 : vector<10x16x256xi1>, vector<10x16x256xf32>
    %103 = vector.extract_strided_slice %97 {offsets = [0, 0, 0], sizes = [8, 16, 256], strides = [1, 1, 1]} : vector<10x16x256xf32> to vector<8x16x256xf32>
    %104 = vector.extract_strided_slice %0 {offsets = [0, 0], sizes = [1, 256], strides = [1, 1]} : vector<9x256xf32> to vector<1x256xf32>
    %105 = vector.shape_cast %104 : vector<1x256xf32> to vector<256xf32>
    %106 = vector.shape_cast %105 : vector<256xf32> to vector<1x1x256xf32>
    %107 = vector.broadcast %106 : vector<1x1x256xf32> to vector<8x16x256xf32>
    %108 = arith.mulf %103, %107 : vector<8x16x256xf32>
    %109 = vector.extract_strided_slice %92 {offsets = [0, 0, 0], sizes = [8, 16, 256], strides = [1, 1, 1]} : vector<10x16x256xf32> to vector<8x16x256xf32>
    %110 = vector.extract_strided_slice %0 {offsets = [1, 0], sizes = [1, 256], strides = [1, 1]} : vector<9x256xf32> to vector<1x256xf32>
    %111 = vector.shape_cast %110 : vector<1x256xf32> to vector<256xf32>
    %112 = vector.shape_cast %111 : vector<256xf32> to vector<1x1x256xf32>
    %113 = vector.broadcast %112 : vector<1x1x256xf32> to vector<8x16x256xf32>
    %114 = arith.mulf %109, %113 : vector<8x16x256xf32>
    %115 = arith.addf %108, %114 : vector<8x16x256xf32>
    %116 = vector.extract_strided_slice %102 {offsets = [0, 0, 0], sizes = [8, 16, 256], strides = [1, 1, 1]} : vector<10x16x256xf32> to vector<8x16x256xf32>
    %117 = vector.extract_strided_slice %0 {offsets = [2, 0], sizes = [1, 256], strides = [1, 1]} : vector<9x256xf32> to vector<1x256xf32>
    %118 = vector.shape_cast %117 : vector<1x256xf32> to vector<256xf32>
    %119 = vector.shape_cast %118 : vector<256xf32> to vector<1x1x256xf32>
    %120 = vector.broadcast %119 : vector<1x1x256xf32> to vector<8x16x256xf32>
    %121 = arith.mulf %116, %120 : vector<8x16x256xf32>
    %122 = arith.addf %115, %121 : vector<8x16x256xf32>
    %123 = vector.extract_strided_slice %97 {offsets = [1, 0, 0], sizes = [8, 16, 256], strides = [1, 1, 1]} : vector<10x16x256xf32> to vector<8x16x256xf32>
    %124 = vector.extract_strided_slice %0 {offsets = [3, 0], sizes = [1, 256], strides = [1, 1]} : vector<9x256xf32> to vector<1x256xf32>
    %125 = vector.shape_cast %124 : vector<1x256xf32> to vector<256xf32>
    %126 = vector.shape_cast %125 : vector<256xf32> to vector<1x1x256xf32>
    %127 = vector.broadcast %126 : vector<1x1x256xf32> to vector<8x16x256xf32>
    %128 = arith.mulf %123, %127 : vector<8x16x256xf32>
    %129 = arith.addf %122, %128 : vector<8x16x256xf32>
    %130 = vector.extract_strided_slice %92 {offsets = [1, 0, 0], sizes = [8, 16, 256], strides = [1, 1, 1]} : vector<10x16x256xf32> to vector<8x16x256xf32>
    %131 = vector.extract_strided_slice %0 {offsets = [4, 0], sizes = [1, 256], strides = [1, 1]} : vector<9x256xf32> to vector<1x256xf32>
    %132 = vector.shape_cast %131 : vector<1x256xf32> to vector<256xf32>
    %133 = vector.shape_cast %132 : vector<256xf32> to vector<1x1x256xf32>
    %134 = vector.broadcast %133 : vector<1x1x256xf32> to vector<8x16x256xf32>
    %135 = arith.mulf %130, %134 : vector<8x16x256xf32>
    %136 = arith.addf %129, %135 : vector<8x16x256xf32>
    %137 = vector.extract_strided_slice %102 {offsets = [1, 0, 0], sizes = [8, 16, 256], strides = [1, 1, 1]} : vector<10x16x256xf32> to vector<8x16x256xf32>
    %138 = vector.extract_strided_slice %0 {offsets = [5, 0], sizes = [1, 256], strides = [1, 1]} : vector<9x256xf32> to vector<1x256xf32>
    %139 = vector.shape_cast %138 : vector<1x256xf32> to vector<256xf32>
    %140 = vector.shape_cast %139 : vector<256xf32> to vector<1x1x256xf32>
    %141 = vector.broadcast %140 : vector<1x1x256xf32> to vector<8x16x256xf32>
    %142 = arith.mulf %137, %141 : vector<8x16x256xf32>
    %143 = arith.addf %136, %142 : vector<8x16x256xf32>
    %144 = vector.extract_strided_slice %97 {offsets = [2, 0, 0], sizes = [8, 16, 256], strides = [1, 1, 1]} : vector<10x16x256xf32> to vector<8x16x256xf32>
    %145 = vector.extract_strided_slice %0 {offsets = [6, 0], sizes = [1, 256], strides = [1, 1]} : vector<9x256xf32> to vector<1x256xf32>
    %146 = vector.shape_cast %145 : vector<1x256xf32> to vector<256xf32>
    %147 = vector.shape_cast %146 : vector<256xf32> to vector<1x1x256xf32>
    %148 = vector.broadcast %147 : vector<1x1x256xf32> to vector<8x16x256xf32>
    %149 = arith.mulf %144, %148 : vector<8x16x256xf32>
    %150 = arith.addf %143, %149 : vector<8x16x256xf32>
    %151 = vector.extract_strided_slice %92 {offsets = [2, 0, 0], sizes = [8, 16, 256], strides = [1, 1, 1]} : vector<10x16x256xf32> to vector<8x16x256xf32>
    %152 = vector.extract_strided_slice %0 {offsets = [7, 0], sizes = [1, 256], strides = [1, 1]} : vector<9x256xf32> to vector<1x256xf32>
    %153 = vector.shape_cast %152 : vector<1x256xf32> to vector<256xf32>
    %154 = vector.shape_cast %153 : vector<256xf32> to vector<1x1x256xf32>
    %155 = vector.broadcast %154 : vector<1x1x256xf32> to vector<8x16x256xf32>
    %156 = arith.mulf %151, %155 : vector<8x16x256xf32>
    %157 = arith.addf %150, %156 : vector<8x16x256xf32>
    %158 = vector.extract_strided_slice %102 {offsets = [2, 0, 0], sizes = [8, 16, 256], strides = [1, 1, 1]} : vector<10x16x256xf32> to vector<8x16x256xf32>
    %159 = vector.extract_strided_slice %0 {offsets = [8, 0], sizes = [1, 256], strides = [1, 1]} : vector<9x256xf32> to vector<1x256xf32>
    %160 = vector.shape_cast %159 : vector<1x256xf32> to vector<256xf32>
    %161 = vector.shape_cast %160 : vector<256xf32> to vector<1x1x256xf32>
    %162 = vector.broadcast %161 : vector<1x1x256xf32> to vector<8x16x256xf32>
    %163 = arith.mulf %158, %162 : vector<8x16x256xf32>
    %164 = arith.addf %157, %163 : vector<8x16x256xf32>
    %165 = vector.shape_cast %2 : vector<256xf32> to vector<1x1x256xf32>
    %166 = vector.broadcast %165 : vector<1x1x256xf32> to vector<8x16x256xf32>
    %167 = arith.addf %164, %166 : vector<8x16x256xf32>
    %c0_21 = arith.constant 0 : index
    %c8 = arith.constant 8 : index
    %c0_22 = arith.constant 0 : index
    %c0_23 = arith.constant 0 : index
    %168 = vector.load %arg5[%c0_21, %c8, %c0_22, %c0_23] : memref<1x16x16x256xf32, #tpu.memory_space<vmem>>, vector<1x8x16x256xf32>
    %169 = vector.shape_cast %168 : vector<1x8x16x256xf32> to vector<8x16x256xf32>
    %170 = vector.shape_cast %167 : vector<8x16x256xf32> to vector<1x8x16x256xf32>
    tpu.vector_store %arg5[%c0_21, %c8, %c0_22, %c0_23], %170 {strides = array<i32>} : memref<1x16x16x256xf32, #tpu.memory_space<vmem>>, vector<1x8x16x256xf32>,
    return
  }
  func.func @transform_0(%arg0: i32, %arg1: i32) -> (i32, i32, i32, i32) {
    %c0_i32 = arith.constant 0 : i32
    %c0_i32_0 = arith.constant 0 : i32
    %c0_i32_1 = arith.constant 0 : i32
    return %arg0, %c0_i32, %c0_i32_0, %arg1 : i32, i32, i32, i32
  }
  func.func @transform_1(%arg0: i32, %arg1: i32) -> (i32, i32) {
    %c0_i32 = arith.constant 0 : i32
    %c0_i32_0 = arith.constant 0 : i32
    return %c0_i32, %arg1 : i32, i32
  }
  func.func @transform_2(%arg0: i32, %arg1: i32) -> (i32, i32) {
    %c0_i32 = arith.constant 0 : i32
    %c0_i32_0 = arith.constant 0 : i32
    return %c0_i32, %arg1 : i32, i32
  }
  func.func @transform_3(%arg0: i32, %arg1: i32) -> (i32, i32, i32, i32) {
    %c0_i32 = arith.constant 0 : i32
    %c0_i32_0 = arith.constant 0 : i32
    %c0_i32_1 = arith.constant 0 : i32
    return %arg0, %c0_i32, %c0_i32_0, %arg1 : i32, i32, i32, i32
  }
}

</mosaic_0001>

<llo_original>
// kernel: dwconv.1
$region0: #{dwconv.1}
  #allocation0 [shape = 'u32[]', space=smem, size = 0x4, offset = 0x4, fixed_abs, tag = 'smem constant byte address 0x4 - core index']
  #allocation1 [shape = 'u32[144,128]{1,0:T(1,128)}', space=vmem, size = 0x12000, scoped, tag = 'internal scratch']
  %s0 = inlined_call_operand.hbm [shape: f32[2,16,16,256], index: 0, kind: input, shape index: {}]
  %s1 = inlined_call_operand.hbm [shape: f32[9,256], index: 1, kind: input, shape index: {}]
  %s2 = inlined_call_operand.vmem [shape: f32[1,256], index: 2, kind: input, shape index: {}]
  %s3 = inlined_call_operand.hbm [shape: f32[2,16,16,256], index: 3, kind: output, shape index: {}]
  %s4 = sld [smem:[#allocation0]]
  $region53: #{dwconv.1} parent=0
    _
  %s6 = ssub.s32 1, %s4
  %s7 = scalar_select 0, %s6, %s4
  $region1: #{dwconv.1} parent=0
    #allocation2 [shape = 'u8[524288]{0}', space=vmem, size = 0x80000, scoped, tag = 'input window, operand 0']
    #allocation3 [shape = 's32[2]{0}', space=sflag, size = 0x8, scoped, tag = 'scoped memory for dwconv.1']
    #allocation4 [shape = 's32[2]{0}', space=sflag, size = 0x8, scoped, tag = 'scoped memory for dwconv.1']
    #allocation5 [shape = 'u8[16384]{0}', space=vmem, size = 0x4000, scoped, tag = 'input window, operand 1, single buffered']
    #allocation6 [shape = 's32[1]{0}', space=sflag, size = 0x4, scoped, tag = 'scoped memory for dwconv.1']
    #allocation7 [shape = 'u8[524288]{0}', space=vmem, size = 0x80000, scoped, tag = 'output window, operand 0']
    %8 = vsyncpa [#allocation3], 0
    %s9 = scalar_lea.sflag [#allocation3], 1
    %10 = vsyncpa %s9, 0
    %11 = vsyncpa [#allocation6], 0
    %12 = vsyncpa [#allocation4], 0
    %s13 = scalar_lea.sflag [#allocation4], 1
    %14 = vsyncpa %s13, 0
    loop: start=0, step=1, limit=4
    $region2: #{dwconv.1} parent=1 // loop_pre_header
      _
    $region3: #{dwconv.1} parent=1 // loop_header
      %s16 = sphi 0, %s20
      %p17 = scmp.ge.s32.totalorder %s16, 4
      %s23 = sphi 0, %s35
      %s24 = sphi 0, %s31
      %s25 = sphi 0, %s23
      %s26 = sphi 0, %s24
      %s27 = sphi 0, %s25
      %s28 = sphi 0, %s26
      %s40 = sphi 0, %s42
      %s43 = sphi 0, %s40
      %s44 = sphi 0, %s43
      %s60 = sphi 0, %s44
      %s66 = sphi 0, %s68
      %s69 = sphi 0, %s66
      %s70 = sphi 0, %s69
      %s86 = sphi 0, %s70
      %s92 = sphi 0, %s94
      %s95 = sphi 0, %s92
      %s96 = sphi 0, %s95
      %s112 = sphi 0, %s96
      %s120 = sphi 0, %s122
      %s123 = sphi 0, %s120
      %s124 = sphi 0, %s123
      %s140 = sphi 0, %s124
    $region4: #{dwconv.1} parent=1 // loop_header_branch
      %19 = sbr.rel (%p17) target = $region8
    $region5: #{dwconv.1} parent=1 // loop_body
      %s21 = ssub.s32 %s16, 1
      %s22 = ssub.s32 %s16, 2
      %s29 = sadd.s32 1, %s24
      %p30 = scmp.ge.s32.totalorder %s29, 1
      %s31 = scalar_select %p30, 0, %s29
      %s32 = sadd.s32 1, %s23
      %s33 = scalar_select %p30, %s32, %s23
      %p34 = scmp.ge.s32.totalorder %s33, 2
      %s35 = scalar_select %p34, 0, %s33
      %s36 = ssub.s32 %s23, %s35
      %s37 = ssub.s32 %s24, %s31
      %s38 = sor.u32 %s36, %s37
      %p39 = scmp.eq.s32.totalorder %s38, 0
      %s41 = sadd.s32 %s40, 1
      %s42 = scalar_select %p39, %s40, %s41
      %p45 = pneg %p39
      %p46 = scmp.eq.s32.totalorder %s16, 1
      %p47 = por %p45, %p46
      %p48 = scmp.ne.s32.totalorder %s40, %s43
      %p49 = scmp.eq.s32.totalorder %s16, 0
      %p50 = por %p48, %p49
      %p51 = scmp.ne.s32.totalorder %s40, %s43
      %p52 = scmp.eq.s32.totalorder %s21, 1
      %p53 = por %p51, %p52
      %p54 = scmp.ne.s32.totalorder %s43, %s44
      %p55 = scmp.eq.s32.totalorder %s21, 0
      %p56 = por %p54, %p55
      %p57 = scmp.ne.s32.totalorder %s43, %s44
      %p58 = scmp.eq.s32.totalorder %s22, 1
      %p59 = por %p57, %p58
      %p61 = scmp.ne.s32.totalorder %s44, %s60
      %p62 = scmp.eq.s32.totalorder %s22, 0
      %p63 = por %p61, %p62
      %s64 = ssub.s32 %s24, %s31
      %p65 = scmp.eq.s32.totalorder %s64, 0
      %s67 = sadd.s32 %s66, 1
      %s68 = scalar_select %p65, %s66, %s67
      %p71 = pneg %p65
      %p72 = scmp.eq.s32.totalorder %s16, 1
      %p73 = por %p71, %p72
      %p74 = scmp.ne.s32.totalorder %s66, %s69
      %p75 = scmp.eq.s32.totalorder %s16, 0
      %p76 = por %p74, %p75
      %p77 = scmp.ne.s32.totalorder %s66, %s69
      %p78 = scmp.eq.s32.totalorder %s21, 1
      %p79 = por %p77, %p78
      %p80 = scmp.ne.s32.totalorder %s69, %s70
      %p81 = scmp.eq.s32.totalorder %s21, 0
      %p82 = por %p80, %p81
      %p83 = scmp.ne.s32.totalorder %s69, %s70
      %p84 = scmp.eq.s32.totalorder %s22, 1
      %p85 = por %p83, %p84
      %p87 = scmp.ne.s32.totalorder %s70, %s86
      %p88 = scmp.eq.s32.totalorder %s22, 0
      %p89 = por %p87, %p88
      %s90 = ssub.s32 %s24, %s31
      %p91 = scmp.eq.s32.totalorder %s90, 0
      %s93 = sadd.s32 %s92, 1
      %s94 = scalar_select %p91, %s92, %s93
      %p97 = pneg %p91
      %p98 = scmp.eq.s32.totalorder %s16, 1
      %p99 = por %p97, %p98
      %p100 = scmp.ne.s32.totalorder %s92, %s95
      %p101 = scmp.eq.s32.totalorder %s16, 0
      %p102 = por %p100, %p101
      %p103 = scmp.ne.s32.totalorder %s92, %s95
      %p104 = scmp.eq.s32.totalorder %s21, 1
      %p105 = por %p103, %p104
      %p106 = scmp.ne.s32.totalorder %s95, %s96
      %p107 = scmp.eq.s32.totalorder %s21, 0
      %p108 = por %p106, %p107
      %p109 = scmp.ne.s32.totalorder %s95, %s96
      %p110 = scmp.eq.s32.totalorder %s22, 1
      %p111 = por %p109, %p110
      %p113 = scmp.ne.s32.totalorder %s96, %s112
      %p114 = scmp.eq.s32.totalorder %s22, 0
      %p115 = por %p113, %p114
      %s116 = ssub.s32 %s23, %s35
      %s117 = ssub.s32 %s24, %s31
      %s118 = sor.u32 %s116, %s117
      %p119 = scmp.eq.s32.totalorder %s118, 0
      %s121 = sadd.s32 %s120, 1
      %s122 = scalar_select %p119, %s120, %s121
      %p125 = pneg %p119
      %p126 = scmp.eq.s32.totalorder %s16, 1
      %p127 = por %p125, %p126
      %p128 = scmp.ne.s32.totalorder %s120, %s123
      %p129 = scmp.eq.s32.totalorder %s16, 0
      %p130 = por %p128, %p129
      %p131 = scmp.ne.s32.totalorder %s120, %s123
      %p132 = scmp.eq.s32.totalorder %s21, 1
      %p133 = por %p131, %p132
      %p134 = scmp.ne.s32.totalorder %s123, %s124
      %p135 = scmp.eq.s32.totalorder %s21, 0
      %p136 = por %p134, %p135
      %p137 = scmp.ne.s32.totalorder %s123, %s124
      %p138 = scmp.eq.s32.totalorder %s22, 1
      %p139 = por %p137, %p138
      %p141 = scmp.ne.s32.totalorder %s124, %s140
      %p142 = scmp.eq.s32.totalorder %s22, 0
      %p143 = por %p141, %p142
      %p144 = scmp.le.s32.totalorder 1, %s16
      %p145 = scmp.lt.s32.totalorder %s16, 3
      %p146 = pnand %p144, %p145
      %p147 = pneg %p146
      // Predicated region
      $region9: #{dwconv.1} parent=5 // pred_check
        _
      $region10: #{dwconv.1} parent=5 // pred_check_branch
        %149 = sbr.rel (%p146) target = $region12
      $region11: #{dwconv.1} parent=5 // pred_region
        %s150 = ssub.s32 %s16, 1
        // Predicated region
        $region13: #{dwconv.1} parent=11 // pred_check
          %p151 = pneg %p82
        $region14: #{dwconv.1} parent=11 // pred_check_branch
          %153 = sbr.rel (%p151) target = $region16
        $region15: #{dwconv.1} parent=11 // pred_region
          %s154 = smul.u32 2, %s26
          %s156 = ssub.s32 512, 512
          %157 = vsyncadd [#allocation6], %s156
          %s158 = smul.addr %s154, 128
          %s159 = scalar_lea.hbm %s1, %s158
          %s160 = sshll.u32 [#allocation5], 4
          %s161 = int_to_ptr.vmem [resolvable:$true] %s160
          %166 = dma.hbm_to_vmem [thread:$0]  %s159, 512, %s161, [#allocation6], 256, 256, 16
        $region16: #{dwconv.1} parent=11 // pred_fallthru
          _
        // Predicated region
        $region17: #{dwconv.1} parent=11 // pred_check
          %p167 = pneg %p108
        $region18: #{dwconv.1} parent=11 // pred_check_branch
          %169 = sbr.rel (%p167) target = $region20
        $region19: #{dwconv.1} parent=11 // pred_region
          %s170 = smul.u32 2, %s26
          %p171 = scmp.lt.s32.totalorder %s170, 1
          %s172 = scalar_select %p171, %s170, 1
          %s173 = scalar_lea.vmem %s2, %s172
          %s174 = smul.u32 2, %s26
        $region20: #{dwconv.1} parent=11 // pred_fallthru
          _
      $region12: #{dwconv.1} parent=5 // pred_fallthru
        _
      %p175 = scmp.lt.s32.totalorder %s16, 2
      // Predicated region
      $region21: #{dwconv.1} parent=5 // pred_check
        %p176 = pneg %p175
      $region22: #{dwconv.1} parent=5 // pred_check_branch
        %178 = sbr.rel (%p176) target = $region24
      $region23: #{dwconv.1} parent=5 // pred_region
        // Predicated region
        $region25: #{dwconv.1} parent=23 // pred_check
          %p179 = pneg %p50
        $region26: #{dwconv.1} parent=23 // pred_check_branch
          %181 = sbr.rel (%p179) target = $region28
        $region27: #{dwconv.1} parent=23 // pred_region
          %s182 = sand.u32 %s40, 1
          %s183 = scalar_lea.sflag [#allocation3], %s182
          %s184 = sand.u32 %s40, 1
          %s185 = smul.addr %s184, 512
          %s186 = scalar_lea.vmem [#allocation2], %s185
          %s187 = smul.u32 2, %s24
          %s189 = ssub.s32 8192, 8192
          %190 = vsyncadd %s183, %s189
          %s191 = smul.addr %s23, 64
          %s192 = sadd.s32 %s187, %s191
          %s193 = smul.addr %s192, 128
          %s194 = scalar_lea.hbm %s0, %s193
          %s195 = sshll.u32 %s186, 4
          %s196 = int_to_ptr.vmem [resolvable:$true] %s195
          %201 = dma.hbm_to_vmem [thread:$0]  %s194, 8192, %s196, %s183, 256, 256, 16
        $region28: #{dwconv.1} parent=23 // pred_fallthru
          _
      $region24: #{dwconv.1} parent=5 // pred_fallthru
        _
      %p202 = scmp.le.s32.totalorder 1, %s16
      %p203 = scmp.lt.s32.totalorder %s16, 3
      %p204 = pnand %p202, %p203
      %p205 = pneg %p204
      // Predicated region
      $region29: #{dwconv.1} parent=5 // pred_check
        _
      $region30: #{dwconv.1} parent=5 // pred_check_branch
        %207 = sbr.rel (%p204) target = $region32
      $region31: #{dwconv.1} parent=5 // pred_region
        %s208 = ssub.s32 %s16, 1
        %s209 = sand.u32 %s43, 1
        %s210 = scalar_lea.sflag [#allocation3], %s209
        %s211 = sand.u32 %s43, 1
        %s212 = smul.addr %s211, 512
        %s213 = scalar_lea.vmem [#allocation2], %s212
        // Predicated region
        $region33: #{dwconv.1} parent=31 // pred_check
          %p214 = pneg %p56
        $region34: #{dwconv.1} parent=31 // pred_check_branch
          %216 = sbr.rel (%p214) target = $region36
        $region35: #{dwconv.1} parent=31 // pred_region
          %217 = dma.done %s210, 8192
        $region36: #{dwconv.1} parent=31 // pred_fallthru
          _
        // Predicated region
        $region37: #{dwconv.1} parent=31 // pred_check
          %p218 = pneg %p82
        $region38: #{dwconv.1} parent=31 // pred_check_branch
          %220 = sbr.rel (%p218) target = $region40
        $region39: #{dwconv.1} parent=31 // pred_region
          %221 = dma.done [#allocation6], 512
        $region40: #{dwconv.1} parent=31 // pred_fallthru
          _
        %s222 = sand.u32 %s43, 1
        %s223 = scalar_lea.sflag [#allocation3], %s222
        %s224 = sand.u32 %s43, 1
        %s225 = smul.addr %s224, 512
        %s226 = scalar_lea.vmem [#allocation2], %s225
        %p227 = pneg %p56
        %p228 = pneg %p53
        %p229 = pneg %p82
        %p230 = pneg %p79
        %s231 = smul.u32 2, %s26
        %p232 = scmp.lt.s32.totalorder %s231, 1
        %s233 = scalar_select %p232, %s231, 1
        %s234 = scalar_lea.vmem %s2, %s233
        %p235 = pneg %p108
        %p236 = pneg %p105
        %p237 = pneg %p136
        %p238 = pneg %p133
        %s239 = sand.u32 %s123, 1
        %s240 = scalar_lea.sflag [#allocation4], %s239
        %s241 = sand.u32 %s123, 1
        %s242 = smul.addr %s241, 512
        %s243 = scalar_lea.vmem [#allocation7], %s242
        %s244 = smul.u32 2, %s26
        %s245 = smul.u32 2, %s26
        %s246 = smul.u32 2, %s26
        %p247 = scmp.lt.s32.totalorder %s246, 1
        %s248 = scalar_select %p247, %s246, 1
        %s249 = scalar_lea.vmem %s2, %s248
        %s250 = smul.u32 2, %s26
        %s251 = smul.u32 2, %s26
        %v252 = vld [vmem:[#allocation5] sm:$0xff]
        %v253 = vld [vmem:[#allocation5 + $0x8] sm:$0xff]
        %v254 = vld [vmem:[#allocation5 + $0x10] sm:$0x1]
        %v255 = vld [vmem:[#allocation5 + $0x18] sm:$0x1]
        %v256 = vld [vmem:[%s249] sm:$0x3]
        %v257 = vlaneseq
        %v258 = vshrl.u32 %v257, 7
        %v259 = vadd.s32 %v258, 8
        %vm260 = vcmp.eq.s32.totalorder %v258, 0
        %vm261 = vcmp.eq.s32.totalorder %v259, 0
        %vm262 = vcmp.eq.s32.totalorder %v258, 15
        %vm263 = vcmp.eq.s32.totalorder %v259, 15
        %v264 = vld [vmem:[%s213] sm:$0xff]
        %v265 = vld [vmem:[%s213 + $0x8] sm:$0xff]
        %v266 = vld [vmem:[%s213 + $0x10] sm:$0xff]
        %v267 = vld [vmem:[%s213 + $0x18] sm:$0xff]
        %v268 = vld [vmem:[%s213 + $0x20] sm:$0xff]
        %v269 = vld [vmem:[%s213 + $0x28] sm:$0xff]
        %v270 = vld [vmem:[%s213 + $0x30] sm:$0xff]
        %v271 = vld [vmem:[%s213 + $0x38] sm:$0xff]
        %v272 = vld [vmem:[%s213 + $0x40] sm:$0xff]
        %v273 = vld [vmem:[%s213 + $0x48] sm:$0xff]
        %v274 = vld [vmem:[%s213 + $0x50] sm:$0xff]
        %v275 = vld [vmem:[%s213 + $0x58] sm:$0xff]
        %v276 = vld [vmem:[%s213 + $0x60] sm:$0xff]
        %v277 = vld [vmem:[%s213 + $0x68] sm:$0xff]
        %v278 = vld [vmem:[%s213 + $0x70] sm:$0xff]
        %v279 = vld [vmem:[%s213 + $0x78] sm:$0xff]
        %v280 = vld [vmem:[%s213 + $0x80] sm:$0xff]
        %v281 = vld [vmem:[%s213 + $0x88] sm:$0xff]
        %v282 = vld [vmem:[%s213 + $0x90] sm:$0xff]
        %v283 = vld [vmem:[%s213 + $0x98] sm:$0xff]
        %v284 = vld [vmem:[%s213 + $0xa0] sm:$0xff]
        %v285 = vld [vmem:[%s213 + $0xa8] sm:$0xff]
        %v286 = vld [vmem:[%s213 + $0xb0] sm:$0xff]
        %v287 = vld [vmem:[%s213 + $0xb8] sm:$0xff]
        %v288 = vld [vmem:[%s213 + $0xc0] sm:$0xff]
        %v289 = vld [vmem:[%s213 + $0xc8] sm:$0xff]
        %v290 = vld [vmem:[%s213 + $0xd0] sm:$0xff]
        %v291 = vld [vmem:[%s213 + $0xd8] sm:$0xff]
        %v292 = vld [vmem:[%s213 + $0xe0] sm:$0xff]
        %v293 = vld [vmem:[%s213 + $0xe8] sm:$0xff]
        %v294 = vld [vmem:[%s213 + $0xf0] sm:$0xff]
        %v295 = vld [vmem:[%s213 + $0xf8] sm:$0xff]
        %v296 = vld [vmem:[%s213 + $0x100] sm:$0xff]
        %v297 = vld [vmem:[%s213 + $0x108] sm:$0xff]
        %v298 = vld [vmem:[%s213 + $0x110] sm:$0xff]
        %v299 = vld [vmem:[%s213 + $0x118] sm:$0xff]
        %v300 = vrot.slane %v264, 7
        %v301 = vrot.slane %v265, 7
        %v302 = vrot.slane %v268, 7
        %v303 = vrot.slane %v269, 7
        %v304 = vrot.slane %v272, 7
        %v305 = vrot.slane %v273, 7
        %v306 = vrot.slane %v276, 7
        %v307 = vrot.slane %v277, 7
        %v308 = vrot.slane %v280, 7
        %v309 = vrot.slane %v281, 7
        %v310 = vrot.slane %v284, 7
        %v311 = vrot.slane %v285, 7
        %v312 = vrot.slane %v288, 7
        %v313 = vrot.slane %v289, 7
        %v314 = vrot.slane %v292, 7
        %v315 = vrot.slane %v293, 7
        %v316 = vrot.slane %v296, 7
        %v317 = vrot.slane %v297, 7
        %v318 = vrot.slane %v266, 7
        %v319 = vrot.slane %v267, 7
        %v320 = vrot.slane %v270, 7
        %v321 = vrot.slane %v271, 7
        %v322 = vrot.slane %v274, 7
        %v323 = vrot.slane %v275, 7
        %v324 = vrot.slane %v278, 7
        %v325 = vrot.slane %v279, 7
        %v326 = vrot.slane %v282, 7
        %v327 = vrot.slane %v283, 7
        %v328 = vrot.slane %v286, 7
        %v329 = vrot.slane %v287, 7
        %v330 = vrot.slane %v290, 7
        %v331 = vrot.slane %v291, 7
        %v332 = vrot.slane %v294, 7
        %v333 = vrot.slane %v295, 7
        %v334 = vrot.slane %v298, 7
        %v335 = vrot.slane %v299, 7
        %vm336 = vcmp.lt.s32.totalorder %v258, 1
        %v337 = vsel %vm336, %v300, %v318
        %v338 = vsel %vm336, %v301, %v319
        %v339 = vsel %vm336, %v302, %v320
        %v340 = vsel %vm336, %v303, %v321
        %v341 = vsel %vm336, %v304, %v322
        %v342 = vsel %vm336, %v305, %v323
        %v343 = vsel %vm336, %v306, %v324
        %v344 = vsel %vm336, %v307, %v325
        %v345 = vsel %vm336, %v308, %v326
        %v346 = vsel %vm336, %v309, %v327
        %v347 = vsel %vm336, %v310, %v328
        %v348 = vsel %vm336, %v311, %v329
        %v349 = vsel %vm336, %v312, %v330
        %v350 = vsel %vm336, %v313, %v331
        %v351 = vsel %vm336, %v314, %v332
        %v352 = vsel %vm336, %v315, %v333
        %v353 = vsel %vm336, %v316, %v334
        %v354 = vsel %vm336, %v317, %v335
        %v355 = vsel %vm336, %v318, %v300
        %v356 = vsel %vm336, %v319, %v301
        %v357 = vsel %vm336, %v320, %v302
        %v358 = vsel %vm336, %v321, %v303
        %v359 = vsel %vm336, %v322, %v304
        %v360 = vsel %vm336, %v323, %v305
        %v361 = vsel %vm336, %v324, %v306
        %v362 = vsel %vm336, %v325, %v307
        %v363 = vsel %vm336, %v326, %v308
        %v364 = vsel %vm336, %v327, %v309
        %v365 = vsel %vm336, %v328, %v310
        %v366 = vsel %vm336, %v329, %v311
        %v367 = vsel %vm336, %v330, %v312
        %v368 = vsel %vm336, %v331, %v313
        %v369 = vsel %vm336, %v332, %v314
        %v370 = vsel %vm336, %v333, %v315
        %v371 = vsel %vm336, %v334, %v316
        %v372 = vsel %vm336, %v335, %v317
        %v373 = vsel %vm260, 1, 0
        %v374 = vsel %vm261, 1, 0
        %vm375 = vcmp.eq.s32.totalorder %v373, 1
        %vm376 = vcmp.eq.s32.totalorder %v374, 1
        %v377 = vsel %vm375, 0.0, 0.0
        %v378 = vsel %vm376, 0.0, 0.0
        %v379 = vsel %vm375, 0.0, %v355
        %v380 = vsel %vm375, 0.0, %v356
        %v381 = vsel %vm376, 0.0, %v337
        %v382 = vsel %vm376, 0.0, %v338
        %v383 = vsel %vm375, 0.0, %v357
        %v384 = vsel %vm375, 0.0, %v358
        %v385 = vsel %vm376, 0.0, %v339
        %v386 = vsel %vm376, 0.0, %v340
        %v387 = vsel %vm375, 0.0, %v359
        %v388 = vsel %vm375, 0.0, %v360
        %v389 = vsel %vm376, 0.0, %v341
        %v390 = vsel %vm376, 0.0, %v342
        %v391 = vsel %vm375, 0.0, %v361
        %v392 = vsel %vm375, 0.0, %v362
        %v393 = vsel %vm376, 0.0, %v343
        %v394 = vsel %vm376, 0.0, %v344
        %v395 = vsel %vm375, 0.0, %v363
        %v396 = vsel %vm375, 0.0, %v364
        %v397 = vsel %vm376, 0.0, %v345
        %v398 = vsel %vm376, 0.0, %v346
        %v399 = vsel %vm375, 0.0, %v365
        %v400 = vsel %vm375, 0.0, %v366
        %v401 = vsel %vm376, 0.0, %v347
        %v402 = vsel %vm376, 0.0, %v348
        %v403 = vsel %vm375, 0.0, %v367
        %v404 = vsel %vm375, 0.0, %v368
        %v405 = vsel %vm376, 0.0, %v349
        %v406 = vsel %vm376, 0.0, %v350
        %v407 = vsel %vm375, 0.0, %v369
        %v408 = vsel %vm375, 0.0, %v370
        %v409 = vsel %vm376, 0.0, %v351
        %v410 = vsel %vm376, 0.0, %v352
        %v411 = vsel %vm375, 0.0, %v371
        %v412 = vsel %vm375, 0.0, %v372
        %v413 = vsel %vm376, 0.0, %v353
        %v414 = vsel %vm376, 0.0, %v354
        %v415 = vrot.slane %v264, 1
        %v416 = vrot.slane %v265, 1
        %v417 = vrot.slane %v268, 1
        %v418 = vrot.slane %v269, 1
        %v419 = vrot.slane %v272, 1
        %v420 = vrot.slane %v273, 1
        %v421 = vrot.slane %v276, 1
        %v422 = vrot.slane %v277, 1
        %v423 = vrot.slane %v280, 1
        %v424 = vrot.slane %v281, 1
        %v425 = vrot.slane %v284, 1
        %v426 = vrot.slane %v285, 1
        %v427 = vrot.slane %v288, 1
        %v428 = vrot.slane %v289, 1
        %v429 = vrot.slane %v292, 1
        %v430 = vrot.slane %v293, 1
        %v431 = vrot.slane %v296, 1
        %v432 = vrot.slane %v297, 1
        %v433 = vrot.slane %v266, 1
        %v434 = vrot.slane %v267, 1
        %v435 = vrot.slane %v270, 1
        %v436 = vrot.slane %v271, 1
        %v437 = vrot.slane %v274, 1
        %v438 = vrot.slane %v275, 1
        %v439 = vrot.slane %v278, 1
        %v440 = vrot.slane %v279, 1
        %v441 = vrot.slane %v282, 1
        %v442 = vrot.slane %v283, 1
        %v443 = vrot.slane %v286, 1
        %v444 = vrot.slane %v287, 1
        %v445 = vrot.slane %v290, 1
        %v446 = vrot.slane %v291, 1
        %v447 = vrot.slane %v294, 1
        %v448 = vrot.slane %v295, 1
        %v449 = vrot.slane %v298, 1
        %v450 = vrot.slane %v299, 1
        %vm451 = vcmp.lt.s32.totalorder %v258, 7
        %v452 = vsel %vm451, %v415, %v433
        %v453 = vsel %vm451, %v416, %v434
        %v454 = vsel %vm451, %v417, %v435
        %v455 = vsel %vm451, %v418, %v436
        %v456 = vsel %vm451, %v419, %v437
        %v457 = vsel %vm451, %v420, %v438
        %v458 = vsel %vm451, %v421, %v439
        %v459 = vsel %vm451, %v422, %v440
        %v460 = vsel %vm451, %v423, %v441
        %v461 = vsel %vm451, %v424, %v442
        %v462 = vsel %vm451, %v425, %v443
        %v463 = vsel %vm451, %v426, %v444
        %v464 = vsel %vm451, %v427, %v445
        %v465 = vsel %vm451, %v428, %v446
        %v466 = vsel %vm451, %v429, %v447
        %v467 = vsel %vm451, %v430, %v448
        %v468 = vsel %vm451, %v431, %v449
        %v469 = vsel %vm451, %v432, %v450
        %v470 = vsel %vm451, %v433, %v415
        %v471 = vsel %vm451, %v434, %v416
        %v472 = vsel %vm451, %v435, %v417
        %v473 = vsel %vm451, %v436, %v418
        %v474 = vsel %vm451, %v437, %v419
        %v475 = vsel %vm451, %v438, %v420
        %v476 = vsel %vm451, %v439, %v421
        %v477 = vsel %vm451, %v440, %v422
        %v478 = vsel %vm451, %v441, %v423
        %v479 = vsel %vm451, %v442, %v424
        %v480 = vsel %vm451, %v443, %v425
        %v481 = vsel %vm451, %v444, %v426
        %v482 = vsel %vm451, %v445, %v427
        %v483 = vsel %vm451, %v446, %v428
        %v484 = vsel %vm451, %v447, %v429
        %v485 = vsel %vm451, %v448, %v430
        %v486 = vsel %vm451, %v449, %v431
        %v487 = vsel %vm451, %v450, %v432
        %v488 = vsel %vm262, 1, 0
        %v489 = vsel %vm263, 1, 0
        %vm490 = vcmp.eq.s32.totalorder %v488, 1
        %vm491 = vcmp.eq.s32.totalorder %v489, 1
        %v492 = vsel %vm490, 0.0, 0.0
        %v493 = vsel %vm491, 0.0, 0.0
        %v494 = vsel %vm490, 0.0, %v452
        %v495 = vsel %vm490, 0.0, %v453
        %v496 = vsel %vm491, 0.0, %v470
        %v497 = vsel %vm491, 0.0, %v471
        %v498 = vsel %vm490, 0.0, %v454
        %v499 = vsel %vm490, 0.0, %v455
        %v500 = vsel %vm491, 0.0, %v472
        %v501 = vsel %vm491, 0.0, %v473
        %v502 = vsel %vm490, 0.0, %v456
        %v503 = vsel %vm490, 0.0, %v457
        %v504 = vsel %vm491, 0.0, %v474
        %v505 = vsel %vm491, 0.0, %v475
        %v506 = vsel %vm490, 0.0, %v458
        %v507 = vsel %vm490, 0.0, %v459
        %v508 = vsel %vm491, 0.0, %v476
        %v509 = vsel %vm491, 0.0, %v477
        %v510 = vsel %vm490, 0.0, %v460
        %v511 = vsel %vm490, 0.0, %v461
        %v512 = vsel %vm491, 0.0, %v478
        %v513 = vsel %vm491, 0.0, %v479
        %v514 = vsel %vm490, 0.0, %v462
        %v515 = vsel %vm490, 0.0, %v463
        %v516 = vsel %vm491, 0.0, %v480
        %v517 = vsel %vm491, 0.0, %v481
        %v518 = vsel %vm490, 0.0, %v464
        %v519 = vsel %vm490, 0.0, %v465
        %v520 = vsel %vm491, 0.0, %v482
        %v521 = vsel %vm491, 0.0, %v483
        %v522 = vsel %vm490, 0.0, %v466
        %v523 = vsel %vm490, 0.0, %v467
        %v524 = vsel %vm491, 0.0, %v484
        %v525 = vsel %vm491, 0.0, %v485
        %v526 = vsel %vm490, 0.0, %v468
        %v527 = vsel %vm490, 0.0, %v469
        %v528 = vsel %vm491, 0.0, %v486
        %v529 = vsel %vm491, 0.0, %v487
        %v530 = vlaneseq
        %v531 = vshrl.u32 %v530, 7
        %v532 = vsub.s32 0, %v531
        %v533 = vrot.slane %v252, %v532
        %v534 = vlaneseq
        %v535 = vshrl.u32 %v534, 7
        %v536 = vsub.s32 0, %v535
        %v537 = vrot.slane %v253, %v536
        %v538 = vmul.f32 %v377, %v533
        %v539 = vmul.f32 %v377, %v537
        %v540 = vmul.f32 %v378, %v533
        %v541 = vmul.f32 %v378, %v537
        %v542 = vmul.f32 %v379, %v533
        %v543 = vmul.f32 %v380, %v537
        %v544 = vmul.f32 %v381, %v533
        %v545 = vmul.f32 %v382, %v537
        %v546 = vmul.f32 %v383, %v533
        %v547 = vmul.f32 %v384, %v537
        %v548 = vmul.f32 %v385, %v533
        %v549 = vmul.f32 %v386, %v537
        %v550 = vmul.f32 %v387, %v533
        %v551 = vmul.f32 %v388, %v537
        %v552 = vmul.f32 %v389, %v533
        %v553 = vmul.f32 %v390, %v537
        %v554 = vmul.f32 %v391, %v533
        %v555 = vmul.f32 %v392, %v537
        %v556 = vmul.f32 %v393, %v533
        %v557 = vmul.f32 %v394, %v537
        %v558 = vmul.f32 %v395, %v533
        %v559 = vmul.f32 %v396, %v537
        %v560 = vmul.f32 %v397, %v533
        %v561 = vmul.f32 %v398, %v537
        %v562 = vmul.f32 %v399, %v533
        %v563 = vmul.f32 %v400, %v537
        %v564 = vmul.f32 %v401, %v533
        %v565 = vmul.f32 %v402, %v537
        %v566 = vmul.f32 %v403, %v533
        %v567 = vmul.f32 %v404, %v537
        %v568 = vmul.f32 %v405, %v533
        %v569 = vmul.f32 %v406, %v537
        %v570 = vlaneseq
        %v571 = vshrl.u32 %v570, 7
        %v572 = vsub.s32 1, %v571
        %v573 = vrot.slane %v252, %v572
        %v574 = vlaneseq
        %v575 = vshrl.u32 %v574, 7
        %v576 = vsub.s32 1, %v575
        %v577 = vrot.slane %v253, %v576
        %v578 = vmul.f32 %v573, 0.0
        %v579 = vmul.f32 %v577, 0.0
        %v580 = vmul.f32 %v264, %v573
        %v581 = vmul.f32 %v265, %v577
        %v582 = vmul.f32 %v266, %v573
        %v583 = vmul.f32 %v267, %v577
        %v584 = vmul.f32 %v268, %v573
        %v585 = vmul.f32 %v269, %v577
        %v586 = vmul.f32 %v270, %v573
        %v587 = vmul.f32 %v271, %v577
        %v588 = vmul.f32 %v272, %v573
        %v589 = vmul.f32 %v273, %v577
        %v590 = vmul.f32 %v274, %v573
        %v591 = vmul.f32 %v275, %v577
        %v592 = vmul.f32 %v276, %v573
        %v593 = vmul.f32 %v277, %v577
        %v594 = vmul.f32 %v278, %v573
        %v595 = vmul.f32 %v279, %v577
        %v596 = vmul.f32 %v280, %v573
        %v597 = vmul.f32 %v281, %v577
        %v598 = vmul.f32 %v282, %v573
        %v599 = vmul.f32 %v283, %v577
        %v600 = vmul.f32 %v284, %v573
        %v601 = vmul.f32 %v285, %v577
        %v602 = vmul.f32 %v286, %v573
        %v603 = vmul.f32 %v287, %v577
        %v604 = vmul.f32 %v288, %v573
        %v605 = vmul.f32 %v289, %v577
        %v606 = vmul.f32 %v290, %v573
        %v607 = vmul.f32 %v291, %v577
        %v608 = vadd.f32 %v538, %v578
        %v609 = vadd.f32 %v539, %v579
        %v610 = vadd.f32 %v540, %v578
        %v611 = vadd.f32 %v541, %v579
        %v612 = vadd.f32 %v542, %v580
        %v613 = vadd.f32 %v543, %v581
        %v614 = vadd.f32 %v544, %v582
        %v615 = vadd.f32 %v545, %v583
        %v616 = vadd.f32 %v546, %v584
        %v617 = vadd.f32 %v547, %v585
        %v618 = vadd.f32 %v548, %v586
        %v619 = vadd.f32 %v549, %v587
        %v620 = vadd.f32 %v550, %v588
        %v621 = vadd.f32 %v551, %v589
        %v622 = vadd.f32 %v552, %v590
        %v623 = vadd.f32 %v553, %v591
        %v624 = vadd.f32 %v554, %v592
        %v625 = vadd.f32 %v555, %v593
        %v626 = vadd.f32 %v556, %v594
        %v627 = vadd.f32 %v557, %v595
        %v628 = vadd.f32 %v558, %v596
        %v629 = vadd.f32 %v559, %v597
        %v630 = vadd.f32 %v560, %v598
        %v631 = vadd.f32 %v561, %v599
        %v632 = vadd.f32 %v562, %v600
        %v633 = vadd.f32 %v563, %v601
        %v634 = vadd.f32 %v564, %v602
        %v635 = vadd.f32 %v565, %v603
        %v636 = vadd.f32 %v566, %v604
        %v637 = vadd.f32 %v567, %v605
        %v638 = vadd.f32 %v568, %v606
        %v639 = vadd.f32 %v569, %v607
        %v640 = vlaneseq
        %v641 = vshrl.u32 %v640, 7
        %v642 = vsub.s32 2, %v641
        %v643 = vrot.slane %v252, %v642
        %v644 = vlaneseq
        %v645 = vshrl.u32 %v644, 7
        %v646 = vsub.s32 2, %v645
        %v647 = vrot.slane %v253, %v646
        %v648 = vmul.f32 %v492, %v643
        %v649 = vmul.f32 %v492, %v647
        %v650 = vmul.f32 %v493, %v643
        %v651 = vmul.f32 %v493, %v647
        %v652 = vmul.f32 %v494, %v643
        %v653 = vmul.f32 %v495, %v647
        %v654 = vmul.f32 %v496, %v643
        %v655 = vmul.f32 %v497, %v647
        %v656 = vmul.f32 %v498, %v643
        %v657 = vmul.f32 %v499, %v647
        %v658 = vmul.f32 %v500, %v643
        %v659 = vmul.f32 %v501, %v647
        %v660 = vmul.f32 %v502, %v643
        %v661 = vmul.f32 %v503, %v647
        %v662 = vmul.f32 %v504, %v643
        %v663 = vmul.f32 %v505, %v647
        %v664 = vmul.f32 %v506, %v643
        %v665 = vmul.f32 %v507, %v647
        %v666 = vmul.f32 %v508, %v643
        %v667 = vmul.f32 %v509, %v647
        %v668 = vmul.f32 %v510, %v643
        %v669 = vmul.f32 %v511, %v647
        %v670 = vmul.f32 %v512, %v643
        %v671 = vmul.f32 %v513, %v647
        %v672 = vmul.f32 %v514, %v643
        %v673 = vmul.f32 %v515, %v647
        %v674 = vmul.f32 %v516, %v643
        %v675 = vmul.f32 %v517, %v647
        %v676 = vmul.f32 %v518, %v643
        %v677 = vmul.f32 %v519, %v647
        %v678 = vmul.f32 %v520, %v643
        %v679 = vmul.f32 %v521, %v647
        %v680 = vadd.f32 %v608, %v648
        %v681 = vadd.f32 %v609, %v649
        %v682 = vadd.f32 %v610, %v650
        %v683 = vadd.f32 %v611, %v651
        %v684 = vadd.f32 %v612, %v652
        %v685 = vadd.f32 %v613, %v653
        %v686 = vadd.f32 %v614, %v654
        %v687 = vadd.f32 %v615, %v655
        %v688 = vadd.f32 %v616, %v656
        %v689 = vadd.f32 %v617, %v657
        %v690 = vadd.f32 %v618, %v658
        %v691 = vadd.f32 %v619, %v659
        %v692 = vadd.f32 %v620, %v660
        %v693 = vadd.f32 %v621, %v661
        %v694 = vadd.f32 %v622, %v662
        %v695 = vadd.f32 %v623, %v663
        %v696 = vadd.f32 %v624, %v664
        %v697 = vadd.f32 %v625, %v665
        %v698 = vadd.f32 %v626, %v666
        %v699 = vadd.f32 %v627, %v667
        %v700 = vadd.f32 %v628, %v668
        %v701 = vadd.f32 %v629, %v669
        %v702 = vadd.f32 %v630, %v670
        %v703 = vadd.f32 %v631, %v671
        %v704 = vadd.f32 %v632, %v672
        %v705 = vadd.f32 %v633, %v673
        %v706 = vadd.f32 %v634, %v674
        %v707 = vadd.f32 %v635, %v675
        %v708 = vadd.f32 %v636, %v676
        %v709 = vadd.f32 %v637, %v677
        %v710 = vadd.f32 %v638, %v678
        %v711 = vadd.f32 %v639, %v679
        %v712 = vlaneseq
        %v713 = vshrl.u32 %v712, 7
        %v714 = vsub.s32 3, %v713
        %v715 = vrot.slane %v252, %v714
        %v716 = vlaneseq
        %v717 = vshrl.u32 %v716, 7
        %v718 = vsub.s32 3, %v717
        %v719 = vrot.slane %v253, %v718
        %v720 = vmul.f32 %v379, %v715
        %v721 = vmul.f32 %v380, %v719
        %v722 = vmul.f32 %v381, %v715
        %v723 = vmul.f32 %v382, %v719
        %v724 = vmul.f32 %v383, %v715
        %v725 = vmul.f32 %v384, %v719
        %v726 = vmul.f32 %v385, %v715
        %v727 = vmul.f32 %v386, %v719
        %v728 = vmul.f32 %v387, %v715
        %v729 = vmul.f32 %v388, %v719
        %v730 = vmul.f32 %v389, %v715
        %v731 = vmul.f32 %v390, %v719
        %v732 = vmul.f32 %v391, %v715
        %v733 = vmul.f32 %v392, %v719
        %v734 = vmul.f32 %v393, %v715
        %v735 = vmul.f32 %v394, %v719
        %v736 = vmul.f32 %v395, %v715
        %v737 = vmul.f32 %v396, %v719
        %v738 = vmul.f32 %v397, %v715
        %v739 = vmul.f32 %v398, %v719
        %v740 = vmul.f32 %v399, %v715
        %v741 = vmul.f32 %v400, %v719
        %v742 = vmul.f32 %v401, %v715
        %v743 = vmul.f32 %v402, %v719
        %v744 = vmul.f32 %v403, %v715
        %v745 = vmul.f32 %v404, %v719
        %v746 = vmul.f32 %v405, %v715
        %v747 = vmul.f32 %v406, %v719
        %v748 = vmul.f32 %v407, %v715
        %v749 = vmul.f32 %v408, %v719
        %v750 = vmul.f32 %v409, %v715
        %v751 = vmul.f32 %v410, %v719
        %v752 = vadd.f32 %v680, %v720
        %v753 = vadd.f32 %v681, %v721
        %v754 = vadd.f32 %v682, %v722
        %v755 = vadd.f32 %v683, %v723
        %v756 = vadd.f32 %v684, %v724
        %v757 = vadd.f32 %v685, %v725
        %v758 = vadd.f32 %v686, %v726
        %v759 = vadd.f32 %v687, %v727
        %v760 = vadd.f32 %v688, %v728
        %v761 = vadd.f32 %v689, %v729
        %v762 = vadd.f32 %v690, %v730
        %v763 = vadd.f32 %v691, %v731
        %v764 = vadd.f32 %v692, %v732
        %v765 = vadd.f32 %v693, %v733
        %v766 = vadd.f32 %v694, %v734
        %v767 = vadd.f32 %v695, %v735
        %v768 = vadd.f32 %v696, %v736
        %v769 = vadd.f32 %v697, %v737
        %v770 = vadd.f32 %v698, %v738
        %v771 = vadd.f32 %v699, %v739
        %v772 = vadd.f32 %v700, %v740
        %v773 = vadd.f32 %v701, %v741
        %v774 = vadd.f32 %v702, %v742
        %v775 = vadd.f32 %v703, %v743
        %v776 = vadd.f32 %v704, %v744
        %v777 = vadd.f32 %v705, %v745
        %v778 = vadd.f32 %v706, %v746
        %v779 = vadd.f32 %v707, %v747
        %v780 = vadd.f32 %v708, %v748
        %v781 = vadd.f32 %v709, %v749
        %v782 = vadd.f32 %v710, %v750
        %v783 = vadd.f32 %v711, %v751
        %v784 = vlaneseq
        %v785 = vshrl.u32 %v784, 7
        %v786 = vsub.s32 4, %v785
        %v787 = vrot.slane %v252, %v786
        %v788 = vlaneseq
        %v789 = vshrl.u32 %v788, 7
        %v790 = vsub.s32 4, %v789
        %v791 = vrot.slane %v253, %v790
        %v792 = vmul.f32 %v264, %v787
        %v793 = vmul.f32 %v265, %v791
        %v794 = vmul.f32 %v266, %v787
        %v795 = vmul.f32 %v267, %v791
        %v796 = vmul.f32 %v268, %v787
        %v797 = vmul.f32 %v269, %v791
        %v798 = vmul.f32 %v270, %v787
        %v799 = vmul.f32 %v271, %v791
        %v800 = vmul.f32 %v272, %v787
        %v801 = vmul.f32 %v273, %v791
        %v802 = vmul.f32 %v274, %v787
        %v803 = vmul.f32 %v275, %v791
        %v804 = vmul.f32 %v276, %v787
        %v805 = vmul.f32 %v277, %v791
        %v806 = vmul.f32 %v278, %v787
        %v807 = vmul.f32 %v279, %v791
        %v808 = vmul.f32 %v280, %v787
        %v809 = vmul.f32 %v281, %v791
        %v810 = vmul.f32 %v282, %v787
        %v811 = vmul.f32 %v283, %v791
        %v812 = vmul.f32 %v284, %v787
        %v813 = vmul.f32 %v285, %v791
        %v814 = vmul.f32 %v286, %v787
        %v815 = vmul.f32 %v287, %v791
        %v816 = vmul.f32 %v288, %v787
        %v817 = vmul.f32 %v289, %v791
        %v818 = vmul.f32 %v290, %v787
        %v819 = vmul.f32 %v291, %v791
        %v820 = vmul.f32 %v292, %v787
        %v821 = vmul.f32 %v293, %v791
        %v822 = vmul.f32 %v294, %v787
        %v823 = vmul.f32 %v295, %v791
        %v824 = vadd.f32 %v752, %v792
        %v825 = vadd.f32 %v753, %v793
        %v826 = vadd.f32 %v754, %v794
        %v827 = vadd.f32 %v755, %v795
        %v828 = vadd.f32 %v756, %v796
        %v829 = vadd.f32 %v757, %v797
        %v830 = vadd.f32 %v758, %v798
        %v831 = vadd.f32 %v759, %v799
        %v832 = vadd.f32 %v760, %v800
        %v833 = vadd.f32 %v761, %v801
        %v834 = vadd.f32 %v762, %v802
        %v835 = vadd.f32 %v763, %v803
        %v836 = vadd.f32 %v764, %v804
        %v837 = vadd.f32 %v765, %v805
        %v838 = vadd.f32 %v766, %v806
        %v839 = vadd.f32 %v767, %v807
        %v840 = vadd.f32 %v768, %v808
        %v841 = vadd.f32 %v769, %v809
        %v842 = vadd.f32 %v770, %v810
        %v843 = vadd.f32 %v771, %v811
        %v844 = vadd.f32 %v772, %v812
        %v845 = vadd.f32 %v773, %v813
        %v846 = vadd.f32 %v774, %v814
        %v847 = vadd.f32 %v775, %v815
        %v848 = vadd.f32 %v776, %v816
        %v849 = vadd.f32 %v777, %v817
        %v850 = vadd.f32 %v778, %v818
        %v851 = vadd.f32 %v779, %v819
        %v852 = vadd.f32 %v780, %v820
        %v853 = vadd.f32 %v781, %v821
        %v854 = vadd.f32 %v782, %v822
        %v855 = vadd.f32 %v783, %v823
        %v856 = vlaneseq
        %v857 = vshrl.u32 %v856, 7
        %v858 = vsub.s32 5, %v857
        %v859 = vrot.slane %v252, %v858
        %v860 = vlaneseq
        %v861 = vshrl.u32 %v860, 7
        %v862 = vsub.s32 5, %v861
        %v863 = vrot.slane %v253, %v862
        %v864 = vmul.f32 %v494, %v859
        %v865 = vmul.f32 %v495, %v863
        %v866 = vmul.f32 %v496, %v859
        %v867 = vmul.f32 %v497, %v863
        %v868 = vmul.f32 %v498, %v859
        %v869 = vmul.f32 %v499, %v863
        %v870 = vmul.f32 %v500, %v859
        %v871 = vmul.f32 %v501, %v863
        %v872 = vmul.f32 %v502, %v859
        %v873 = vmul.f32 %v503, %v863
        %v874 = vmul.f32 %v504, %v859
        %v875 = vmul.f32 %v505, %v863
        %v876 = vmul.f32 %v506, %v859
        %v877 = vmul.f32 %v507, %v863
        %v878 = vmul.f32 %v508, %v859
        %v879 = vmul.f32 %v509, %v863
        %v880 = vmul.f32 %v510, %v859
        %v881 = vmul.f32 %v511, %v863
        %v882 = vmul.f32 %v512, %v859
        %v883 = vmul.f32 %v513, %v863
        %v884 = vmul.f32 %v514, %v859
        %v885 = vmul.f32 %v515, %v863
        %v886 = vmul.f32 %v516, %v859
        %v887 = vmul.f32 %v517, %v863
        %v888 = vmul.f32 %v518, %v859
        %v889 = vmul.f32 %v519, %v863
        %v890 = vmul.f32 %v520, %v859
        %v891 = vmul.f32 %v521, %v863
        %v892 = vmul.f32 %v522, %v859
        %v893 = vmul.f32 %v523, %v863
        %v894 = vmul.f32 %v524, %v859
        %v895 = vmul.f32 %v525, %v863
        %v896 = vadd.f32 %v824, %v864
        %v897 = vadd.f32 %v825, %v865
        %v898 = vadd.f32 %v826, %v866
        %v899 = vadd.f32 %v827, %v867
        %v900 = vadd.f32 %v828, %v868
        %v901 = vadd.f32 %v829, %v869
        %v902 = vadd.f32 %v830, %v870
        %v903 = vadd.f32 %v831, %v871
        %v904 = vadd.f32 %v832, %v872
        %v905 = vadd.f32 %v833, %v873
        %v906 = vadd.f32 %v834, %v874
        %v907 = vadd.f32 %v835, %v875
        %v908 = vadd.f32 %v836, %v876
        %v909 = vadd.f32 %v837, %v877
        %v910 = vadd.f32 %v838, %v878
        %v911 = vadd.f32 %v839, %v879
        %v912 = vadd.f32 %v840, %v880
        %v913 = vadd.f32 %v841, %v881
        %v914 = vadd.f32 %v842, %v882
        %v915 = vadd.f32 %v843, %v883
        %v916 = vadd.f32 %v844, %v884
        %v917 = vadd.f32 %v845, %v885
        %v918 = vadd.f32 %v846, %v886
        %v919 = vadd.f32 %v847, %v887
        %v920 = vadd.f32 %v848, %v888
        %v921 = vadd.f32 %v849, %v889
        %v922 = vadd.f32 %v850, %v890
        %v923 = vadd.f32 %v851, %v891
        %v924 = vadd.f32 %v852, %v892
        %v925 = vadd.f32 %v853, %v893
        %v926 = vadd.f32 %v854, %v894
        %v927 = vadd.f32 %v855, %v895
        %v928 = vlaneseq
        %v929 = vshrl.u32 %v928, 7
        %v930 = vsub.s32 6, %v929
        %v931 = vrot.slane %v252, %v930
        %v932 = vlaneseq
        %v933 = vshrl.u32 %v932, 7
        %v934 = vsub.s32 6, %v933
        %v935 = vrot.slane %v253, %v934
        %v936 = vmul.f32 %v383, %v931
        %v937 = vmul.f32 %v384, %v935
        %v938 = vmul.f32 %v385, %v931
        %v939 = vmul.f32 %v386, %v935
        %v940 = vmul.f32 %v387, %v931
        %v941 = vmul.f32 %v388, %v935
        %v942 = vmul.f32 %v389, %v931
        %v943 = vmul.f32 %v390, %v935
        %v944 = vmul.f32 %v391, %v931
        %v945 = vmul.f32 %v392, %v935
        %v946 = vmul.f32 %v393, %v931
        %v947 = vmul.f32 %v394, %v935
        %v948 = vmul.f32 %v395, %v931
        %v949 = vmul.f32 %v396, %v935
        %v950 = vmul.f32 %v397, %v931
        %v951 = vmul.f32 %v398, %v935
        %v952 = vmul.f32 %v399, %v931
        %v953 = vmul.f32 %v400, %v935
        %v954 = vmul.f32 %v401, %v931
        %v955 = vmul.f32 %v402, %v935
        %v956 = vmul.f32 %v403, %v931
        %v957 = vmul.f32 %v404, %v935
        %v958 = vmul.f32 %v405, %v931
        %v959 = vmul.f32 %v406, %v935
        %v960 = vmul.f32 %v407, %v931
        %v961 = vmul.f32 %v408, %v935
        %v962 = vmul.f32 %v409, %v931
        %v963 = vmul.f32 %v410, %v935
        %v964 = vmul.f32 %v411, %v931
        %v965 = vmul.f32 %v412, %v935
        %v966 = vmul.f32 %v413, %v931
        %v967 = vmul.f32 %v414, %v935
        %v968 = vadd.f32 %v896, %v936
        %v969 = vadd.f32 %v897, %v937
        %v970 = vadd.f32 %v898, %v938
        %v971 = vadd.f32 %v899, %v939
        %v972 = vadd.f32 %v900, %v940
        %v973 = vadd.f32 %v901, %v941
        %v974 = vadd.f32 %v902, %v942
        %v975 = vadd.f32 %v903, %v943
        %v976 = vadd.f32 %v904, %v944
        %v977 = vadd.f32 %v905, %v945
        %v978 = vadd.f32 %v906, %v946
        %v979 = vadd.f32 %v907, %v947
        %v980 = vadd.f32 %v908, %v948
        %v981 = vadd.f32 %v909, %v949
        %v982 = vadd.f32 %v910, %v950
        %v983 = vadd.f32 %v911, %v951
        %v984 = vadd.f32 %v912, %v952
        %v985 = vadd.f32 %v913, %v953
        %v986 = vadd.f32 %v914, %v954
        %v987 = vadd.f32 %v915, %v955
        %v988 = vadd.f32 %v916, %v956
        %v989 = vadd.f32 %v917, %v957
        %v990 = vadd.f32 %v918, %v958
        %v991 = vadd.f32 %v919, %v959
        %v992 = vadd.f32 %v920, %v960
        %v993 = vadd.f32 %v921, %v961
        %v994 = vadd.f32 %v922, %v962
        %v995 = vadd.f32 %v923, %v963
        %v996 = vadd.f32 %v924, %v964
        %v997 = vadd.f32 %v925, %v965
        %v998 = vadd.f32 %v926, %v966
        %v999 = vadd.f32 %v927, %v967
        %v1000 = vlaneseq
        %v1001 = vshrl.u32 %v1000, 7
        %v1002 = vsub.s32 7, %v1001
        %v1003 = vrot.slane %v252, %v1002
        %v1004 = vlaneseq
        %v1005 = vshrl.u32 %v1004, 7
        %v1006 = vsub.s32 7, %v1005
        %v1007 = vrot.slane %v253, %v1006
        %v1008 = vmul.f32 %v268, %v1003
        %v1009 = vmul.f32 %v269, %v1007
        %v1010 = vmul.f32 %v270, %v1003
        %v1011 = vmul.f32 %v271, %v1007
        %v1012 = vmul.f32 %v272, %v1003
        %v1013 = vmul.f32 %v273, %v1007
        %v1014 = vmul.f32 %v274, %v1003
        %v1015 = vmul.f32 %v275, %v1007
        %v1016 = vmul.f32 %v276, %v1003
        %v1017 = vmul.f32 %v277, %v1007
        %v1018 = vmul.f32 %v278, %v1003
        %v1019 = vmul.f32 %v279, %v1007
        %v1020 = vmul.f32 %v280, %v1003
        %v1021 = vmul.f32 %v281, %v1007
        %v1022 = vmul.f32 %v282, %v1003
        %v1023 = vmul.f32 %v283, %v1007
        %v1024 = vmul.f32 %v284, %v1003
        %v1025 = vmul.f32 %v285, %v1007
        %v1026 = vmul.f32 %v286, %v1003
        %v1027 = vmul.f32 %v287, %v1007
        %v1028 = vmul.f32 %v288, %v1003
        %v1029 = vmul.f32 %v289, %v1007
        %v1030 = vmul.f32 %v290, %v1003
        %v1031 = vmul.f32 %v291, %v1007
        %v1032 = vmul.f32 %v292, %v1003
        %v1033 = vmul.f32 %v293, %v1007
        %v1034 = vmul.f32 %v294, %v1003
        %v1035 = vmul.f32 %v295, %v1007
        %v1036 = vmul.f32 %v296, %v1003
        %v1037 = vmul.f32 %v297, %v1007
        %v1038 = vmul.f32 %v298, %v1003
        %v1039 = vmul.f32 %v299, %v1007
        %v1040 = vadd.f32 %v968, %v1008
        %v1041 = vadd.f32 %v969, %v1009
        %v1042 = vadd.f32 %v970, %v1010
        %v1043 = vadd.f32 %v971, %v1011
        %v1044 = vadd.f32 %v972, %v1012
        %v1045 = vadd.f32 %v973, %v1013
        %v1046 = vadd.f32 %v974, %v1014
        %v1047 = vadd.f32 %v975, %v1015
        %v1048 = vadd.f32 %v976, %v1016
        %v1049 = vadd.f32 %v977, %v1017
        %v1050 = vadd.f32 %v978, %v1018
        %v1051 = vadd.f32 %v979, %v1019
        %v1052 = vadd.f32 %v980, %v1020
        %v1053 = vadd.f32 %v981, %v1021
        %v1054 = vadd.f32 %v982, %v1022
        %v1055 = vadd.f32 %v983, %v1023
        %v1056 = vadd.f32 %v984, %v1024
        %v1057 = vadd.f32 %v985, %v1025
        %v1058 = vadd.f32 %v986, %v1026
        %v1059 = vadd.f32 %v987, %v1027
        %v1060 = vadd.f32 %v988, %v1028
        %v1061 = vadd.f32 %v989, %v1029
        %v1062 = vadd.f32 %v990, %v1030
        %v1063 = vadd.f32 %v991, %v1031
        %v1064 = vadd.f32 %v992, %v1032
        %v1065 = vadd.f32 %v993, %v1033
        %v1066 = vadd.f32 %v994, %v1034
        %v1067 = vadd.f32 %v995, %v1035
        %v1068 = vadd.f32 %v996, %v1036
        %v1069 = vadd.f32 %v997, %v1037
        %v1070 = vadd.f32 %v998, %v1038
        %v1071 = vadd.f32 %v999, %v1039
        %v1072 = vlaneseq
        %v1073 = vshrl.u32 %v1072, 7
        %v1074 = vsub.s32 0, %v1073
        %v1075 = vrot.slane %v254, %v1074
        %v1076 = vlaneseq
        %v1077 = vshrl.u32 %v1076, 7
        %v1078 = vsub.s32 0, %v1077
        %v1079 = vrot.slane %v255, %v1078
        %v1080 = vmul.f32 %v498, %v1075
        %v1081 = vmul.f32 %v499, %v1079
        %v1082 = vmul.f32 %v500, %v1075
        %v1083 = vmul.f32 %v501, %v1079
        %v1084 = vmul.f32 %v502, %v1075
        %v1085 = vmul.f32 %v503, %v1079
        %v1086 = vmul.f32 %v504, %v1075
        %v1087 = vmul.f32 %v505, %v1079
        %v1088 = vmul.f32 %v506, %v1075
        %v1089 = vmul.f32 %v507, %v1079
        %v1090 = vmul.f32 %v508, %v1075
        %v1091 = vmul.f32 %v509, %v1079
        %v1092 = vmul.f32 %v510, %v1075
        %v1093 = vmul.f32 %v511, %v1079
        %v1094 = vmul.f32 %v512, %v1075
        %v1095 = vmul.f32 %v513, %v1079
        %v1096 = vmul.f32 %v514, %v1075
        %v1097 = vmul.f32 %v515, %v1079
        %v1098 = vmul.f32 %v516, %v1075
        %v1099 = vmul.f32 %v517, %v1079
        %v1100 = vmul.f32 %v518, %v1075
        %v1101 = vmul.f32 %v519, %v1079
        %v1102 = vmul.f32 %v520, %v1075
        %v1103 = vmul.f32 %v521, %v1079
        %v1104 = vmul.f32 %v522, %v1075
        %v1105 = vmul.f32 %v523, %v1079
        %v1106 = vmul.f32 %v524, %v1075
        %v1107 = vmul.f32 %v525, %v1079
        %v1108 = vmul.f32 %v526, %v1075
        %v1109 = vmul.f32 %v527, %v1079
        %v1110 = vmul.f32 %v528, %v1075
        %v1111 = vmul.f32 %v529, %v1079
        %v1112 = vadd.f32 %v1040, %v1080
        %v1113 = vadd.f32 %v1041, %v1081
        %v1114 = vadd.f32 %v1042, %v1082
        %v1115 = vadd.f32 %v1043, %v1083
        %v1116 = vadd.f32 %v1044, %v1084
        %v1117 = vadd.f32 %v1045, %v1085
        %v1118 = vadd.f32 %v1046, %v1086
        %v1119 = vadd.f32 %v1047, %v1087
        %v1120 = vadd.f32 %v1048, %v1088
        %v1121 = vadd.f32 %v1049, %v1089
        %v1122 = vadd.f32 %v1050, %v1090
        %v1123 = vadd.f32 %v1051, %v1091
        %v1124 = vadd.f32 %v1052, %v1092
        %v1125 = vadd.f32 %v1053, %v1093
        %v1126 = vadd.f32 %v1054, %v1094
        %v1127 = vadd.f32 %v1055, %v1095
        %v1128 = vadd.f32 %v1056, %v1096
        %v1129 = vadd.f32 %v1057, %v1097
        %v1130 = vadd.f32 %v1058, %v1098
        %v1131 = vadd.f32 %v1059, %v1099
        %v1132 = vadd.f32 %v1060, %v1100
        %v1133 = vadd.f32 %v1061, %v1101
        %v1134 = vadd.f32 %v1062, %v1102
        %v1135 = vadd.f32 %v1063, %v1103
        %v1136 = vadd.f32 %v1064, %v1104
        %v1137 = vadd.f32 %v1065, %v1105
        %v1138 = vadd.f32 %v1066, %v1106
        %v1139 = vadd.f32 %v1067, %v1107
        %v1140 = vadd.f32 %v1068, %v1108
        %v1141 = vadd.f32 %v1069, %v1109
        %v1142 = vadd.f32 %v1070, %v1110
        %v1143 = vadd.f32 %v1071, %v1111
        %v1145 = vlaneseq
        %v1146 = vshrl.u32 %v1145, 7
        %v1147 = vsub.s32 0, %v1146
        %v1148 = vrot.slane %v256, %v1147
        %v1149 = vlaneseq
        %v1150 = vshrl.u32 %v1149, 7
        %v1151 = vsub.s32 1, %v1150
        %v1152 = vrot.slane %v256, %v1151
        %v1155 = vadd.f32 %v1112, %v1148
        %v1156 = vadd.f32 %v1113, %v1152
        %v1157 = vadd.f32 %v1114, %v1148
        %v1158 = vadd.f32 %v1115, %v1152
        %v1159 = vadd.f32 %v1116, %v1148
        %v1160 = vadd.f32 %v1117, %v1152
        %v1161 = vadd.f32 %v1118, %v1148
        %v1162 = vadd.f32 %v1119, %v1152
        %v1163 = vadd.f32 %v1120, %v1148
        %v1164 = vadd.f32 %v1121, %v1152
        %v1165 = vadd.f32 %v1122, %v1148
        %v1166 = vadd.f32 %v1123, %v1152
        %v1167 = vadd.f32 %v1124, %v1148
        %v1168 = vadd.f32 %v1125, %v1152
        %v1169 = vadd.f32 %v1126, %v1148
        %v1170 = vadd.f32 %v1127, %v1152
        %v1171 = vadd.f32 %v1128, %v1148
        %v1172 = vadd.f32 %v1129, %v1152
        %v1173 = vadd.f32 %v1130, %v1148
        %v1174 = vadd.f32 %v1131, %v1152
        %v1175 = vadd.f32 %v1132, %v1148
        %v1176 = vadd.f32 %v1133, %v1152
        %v1177 = vadd.f32 %v1134, %v1148
        %v1178 = vadd.f32 %v1135, %v1152
        %v1179 = vadd.f32 %v1136, %v1148
        %v1180 = vadd.f32 %v1137, %v1152
        %v1181 = vadd.f32 %v1138, %v1148
        %v1182 = vadd.f32 %v1139, %v1152
        %v1183 = vadd.f32 %v1140, %v1148
        %v1184 = vadd.f32 %v1141, %v1152
        %v1185 = vadd.f32 %v1142, %v1148
        %v1186 = vadd.f32 %v1143, %v1152
        %1187 = vst [vmem:[%s243] sm:$0xff] %v1155
        %1188 = vst [vmem:[%s243 + $0x8] sm:$0xff] %v1156
        %1189 = vst [vmem:[%s243 + $0x10] sm:$0xff] %v1157
        %1190 = vst [vmem:[%s243 + $0x18] sm:$0xff] %v1158
        %1191 = vst [vmem:[%s243 + $0x20] sm:$0xff] %v1159
        %1192 = vst [vmem:[%s243 + $0x28] sm:$0xff] %v1160
        %1193 = vst [vmem:[%s243 + $0x30] sm:$0xff] %v1161
        %1194 = vst [vmem:[%s243 + $0x38] sm:$0xff] %v1162
        %1195 = vst [vmem:[%s243 + $0x40] sm:$0xff] %v1163
        %1196 = vst [vmem:[%s243 + $0x48] sm:$0xff] %v1164
        %1197 = vst [vmem:[%s243 + $0x50] sm:$0xff] %v1165
        %1198 = vst [vmem:[%s243 + $0x58] sm:$0xff] %v1166
        %1199 = vst [vmem:[%s243 + $0x60] sm:$0xff] %v1167
        %1200 = vst [vmem:[%s243 + $0x68] sm:$0xff] %v1168
        %1201 = vst [vmem:[%s243 + $0x70] sm:$0xff] %v1169
        %1202 = vst [vmem:[%s243 + $0x78] sm:$0xff] %v1170
        %1203 = vst [vmem:[%s243 + $0x80] sm:$0xff] %v1171
        %1204 = vst [vmem:[%s243 + $0x88] sm:$0xff] %v1172
        %1205 = vst [vmem:[%s243 + $0x90] sm:$0xff] %v1173
        %1206 = vst [vmem:[%s243 + $0x98] sm:$0xff] %v1174
        %1207 = vst [vmem:[%s243 + $0xa0] sm:$0xff] %v1175
        %1208 = vst [vmem:[%s243 + $0xa8] sm:$0xff] %v1176
        %1209 = vst [vmem:[%s243 + $0xb0] sm:$0xff] %v1177
        %1210 = vst [vmem:[%s243 + $0xb8] sm:$0xff] %v1178
        %1211 = vst [vmem:[%s243 + $0xc0] sm:$0xff] %v1179
        %1212 = vst [vmem:[%s243 + $0xc8] sm:$0xff] %v1180
        %1213 = vst [vmem:[%s243 + $0xd0] sm:$0xff] %v1181
        %1214 = vst [vmem:[%s243 + $0xd8] sm:$0xff] %v1182
        %1215 = vst [vmem:[%s243 + $0xe0] sm:$0xff] %v1183
        %1216 = vst [vmem:[%s243 + $0xe8] sm:$0xff] %v1184
        %1217 = vst [vmem:[%s243 + $0xf0] sm:$0xff] %v1185
        %1218 = vst [vmem:[%s243 + $0xf8] sm:$0xff] %v1186
        %s1219 = scalar_lea.vmem %s213, 224 [#allocation2]
        %v1220 = vld [vmem:[%s1219] sm:$0xff]
        %v1221 = vld [vmem:[%s1219 + $0x8] sm:$0xff]
        %v1222 = vld [vmem:[%s1219 + $0x10] sm:$0xff]
        %v1223 = vld [vmem:[%s1219 + $0x18] sm:$0xff]
        %v1224 = vld [vmem:[%s1219 + $0x20] sm:$0xff]
        %v1225 = vld [vmem:[%s1219 + $0x28] sm:$0xff]
        %v1226 = vld [vmem:[%s1219 + $0x30] sm:$0xff]
        %v1227 = vld [vmem:[%s1219 + $0x38] sm:$0xff]
        %v1228 = vld [vmem:[%s1219 + $0x40] sm:$0xff]
        %v1229 = vld [vmem:[%s1219 + $0x48] sm:$0xff]
        %v1230 = vld [vmem:[%s1219 + $0x50] sm:$0xff]
        %v1231 = vld [vmem:[%s1219 + $0x58] sm:$0xff]
        %v1232 = vld [vmem:[%s1219 + $0x60] sm:$0xff]
        %v1233 = vld [vmem:[%s1219 + $0x68] sm:$0xff]
        %v1234 = vld [vmem:[%s1219 + $0x70] sm:$0xff]
        %v1235 = vld [vmem:[%s1219 + $0x78] sm:$0xff]
        %v1236 = vld [vmem:[%s1219 + $0x80] sm:$0xff]
        %v1237 = vld [vmem:[%s1219 + $0x88] sm:$0xff]
        %v1238 = vld [vmem:[%s1219 + $0x90] sm:$0xff]
        %v1239 = vld [vmem:[%s1219 + $0x98] sm:$0xff]
        %v1240 = vld [vmem:[%s1219 + $0xa0] sm:$0xff]
        %v1241 = vld [vmem:[%s1219 + $0xa8] sm:$0xff]
        %v1242 = vld [vmem:[%s1219 + $0xb0] sm:$0xff]
        %v1243 = vld [vmem:[%s1219 + $0xb8] sm:$0xff]
        %v1244 = vld [vmem:[%s1219 + $0xc0] sm:$0xff]
        %v1245 = vld [vmem:[%s1219 + $0xc8] sm:$0xff]
        %v1246 = vld [vmem:[%s1219 + $0xd0] sm:$0xff]
        %v1247 = vld [vmem:[%s1219 + $0xd8] sm:$0xff]
        %v1248 = vld [vmem:[%s1219 + $0xe0] sm:$0xff]
        %v1249 = vld [vmem:[%s1219 + $0xe8] sm:$0xff]
        %v1250 = vld [vmem:[%s1219 + $0xf0] sm:$0xff]
        %v1251 = vld [vmem:[%s1219 + $0xf8] sm:$0xff]
        %v1252 = vld [vmem:[%s1219 + $0x100] sm:$0xff]
        %v1253 = vld [vmem:[%s1219 + $0x108] sm:$0xff]
        %v1254 = vld [vmem:[%s1219 + $0x110] sm:$0xff]
        %v1255 = vld [vmem:[%s1219 + $0x118] sm:$0xff]
        %v1256 = vrot.slane %v1220, 7
        %v1257 = vrot.slane %v1221, 7
        %v1258 = vrot.slane %v1224, 7
        %v1259 = vrot.slane %v1225, 7
        %v1260 = vrot.slane %v1228, 7
        %v1261 = vrot.slane %v1229, 7
        %v1262 = vrot.slane %v1232, 7
        %v1263 = vrot.slane %v1233, 7
        %v1264 = vrot.slane %v1236, 7
        %v1265 = vrot.slane %v1237, 7
        %v1266 = vrot.slane %v1240, 7
        %v1267 = vrot.slane %v1241, 7
        %v1268 = vrot.slane %v1244, 7
        %v1269 = vrot.slane %v1245, 7
        %v1270 = vrot.slane %v1248, 7
        %v1271 = vrot.slane %v1249, 7
        %v1272 = vrot.slane %v1252, 7
        %v1273 = vrot.slane %v1253, 7
        %v1274 = vrot.slane %v1222, 7
        %v1275 = vrot.slane %v1223, 7
        %v1276 = vrot.slane %v1226, 7
        %v1277 = vrot.slane %v1227, 7
        %v1278 = vrot.slane %v1230, 7
        %v1279 = vrot.slane %v1231, 7
        %v1280 = vrot.slane %v1234, 7
        %v1281 = vrot.slane %v1235, 7
        %v1282 = vrot.slane %v1238, 7
        %v1283 = vrot.slane %v1239, 7
        %v1284 = vrot.slane %v1242, 7
        %v1285 = vrot.slane %v1243, 7
        %v1286 = vrot.slane %v1246, 7
        %v1287 = vrot.slane %v1247, 7
        %v1288 = vrot.slane %v1250, 7
        %v1289 = vrot.slane %v1251, 7
        %v1290 = vrot.slane %v1254, 7
        %v1291 = vrot.slane %v1255, 7
        %v1292 = vsel %vm336, %v1256, %v1274
        %v1293 = vsel %vm336, %v1257, %v1275
        %v1294 = vsel %vm336, %v1258, %v1276
        %v1295 = vsel %vm336, %v1259, %v1277
        %v1296 = vsel %vm336, %v1260, %v1278
        %v1297 = vsel %vm336, %v1261, %v1279
        %v1298 = vsel %vm336, %v1262, %v1280
        %v1299 = vsel %vm336, %v1263, %v1281
        %v1300 = vsel %vm336, %v1264, %v1282
        %v1301 = vsel %vm336, %v1265, %v1283
        %v1302 = vsel %vm336, %v1266, %v1284
        %v1303 = vsel %vm336, %v1267, %v1285
        %v1304 = vsel %vm336, %v1268, %v1286
        %v1305 = vsel %vm336, %v1269, %v1287
        %v1306 = vsel %vm336, %v1270, %v1288
        %v1307 = vsel %vm336, %v1271, %v1289
        %v1308 = vsel %vm336, %v1272, %v1290
        %v1309 = vsel %vm336, %v1273, %v1291
        %v1310 = vsel %vm336, %v1274, %v1256
        %v1311 = vsel %vm336, %v1275, %v1257
        %v1312 = vsel %vm336, %v1276, %v1258
        %v1313 = vsel %vm336, %v1277, %v1259
        %v1314 = vsel %vm336, %v1278, %v1260
        %v1315 = vsel %vm336, %v1279, %v1261
        %v1316 = vsel %vm336, %v1280, %v1262
        %v1317 = vsel %vm336, %v1281, %v1263
        %v1318 = vsel %vm336, %v1282, %v1264
        %v1319 = vsel %vm336, %v1283, %v1265
        %v1320 = vsel %vm336, %v1284, %v1266
        %v1321 = vsel %vm336, %v1285, %v1267
        %v1322 = vsel %vm336, %v1286, %v1268
        %v1323 = vsel %vm336, %v1287, %v1269
        %v1324 = vsel %vm336, %v1288, %v1270
        %v1325 = vsel %vm336, %v1289, %v1271
        %v1326 = vsel %vm336, %v1290, %v1272
        %v1327 = vsel %vm336, %v1291, %v1273
        %v1328 = vsel %vm375, 0.0, %v1310
        %v1329 = vsel %vm375, 0.0, %v1311
        %v1330 = vsel %vm376, 0.0, %v1292
        %v1331 = vsel %vm376, 0.0, %v1293
        %v1332 = vsel %vm375, 0.0, %v1312
        %v1333 = vsel %vm375, 0.0, %v1313
        %v1334 = vsel %vm376, 0.0, %v1294
        %v1335 = vsel %vm376, 0.0, %v1295
        %v1336 = vsel %vm375, 0.0, %v1314
        %v1337 = vsel %vm375, 0.0, %v1315
        %v1338 = vsel %vm376, 0.0, %v1296
        %v1339 = vsel %vm376, 0.0, %v1297
        %v1340 = vsel %vm375, 0.0, %v1316
        %v1341 = vsel %vm375, 0.0, %v1317
        %v1342 = vsel %vm376, 0.0, %v1298
        %v1343 = vsel %vm376, 0.0, %v1299
        %v1344 = vsel %vm375, 0.0, %v1318
        %v1345 = vsel %vm375, 0.0, %v1319
        %v1346 = vsel %vm376, 0.0, %v1300
        %v1347 = vsel %vm376, 0.0, %v1301
        %v1348 = vsel %vm375, 0.0, %v1320
        %v1349 = vsel %vm375, 0.0, %v1321
        %v1350 = vsel %vm376, 0.0, %v1302
        %v1351 = vsel %vm376, 0.0, %v1303
        %v1352 = vsel %vm375, 0.0, %v1322
        %v1353 = vsel %vm375, 0.0, %v1323
        %v1354 = vsel %vm376, 0.0, %v1304
        %v1355 = vsel %vm376, 0.0, %v1305
        %v1356 = vsel %vm375, 0.0, %v1324
        %v1357 = vsel %vm375, 0.0, %v1325
        %v1358 = vsel %vm376, 0.0, %v1306
        %v1359 = vsel %vm376, 0.0, %v1307
        %v1360 = vsel %vm375, 0.0, %v1326
        %v1361 = vsel %vm375, 0.0, %v1327
        %v1362 = vsel %vm376, 0.0, %v1308
        %v1363 = vsel %vm376, 0.0, %v1309
        %v1364 = vrot.slane %v1220, 1
        %v1365 = vrot.slane %v1221, 1
        %v1366 = vrot.slane %v1224, 1
        %v1367 = vrot.slane %v1225, 1
        %v1368 = vrot.slane %v1228, 1
        %v1369 = vrot.slane %v1229, 1
        %v1370 = vrot.slane %v1232, 1
        %v1371 = vrot.slane %v1233, 1
        %v1372 = vrot.slane %v1236, 1
        %v1373 = vrot.slane %v1237, 1
        %v1374 = vrot.slane %v1240, 1
        %v1375 = vrot.slane %v1241, 1
        %v1376 = vrot.slane %v1244, 1
        %v1377 = vrot.slane %v1245, 1
        %v1378 = vrot.slane %v1248, 1
        %v1379 = vrot.slane %v1249, 1
        %v1380 = vrot.slane %v1252, 1
        %v1381 = vrot.slane %v1253, 1
        %v1382 = vrot.slane %v1222, 1
        %v1383 = vrot.slane %v1223, 1
        %v1384 = vrot.slane %v1226, 1
        %v1385 = vrot.slane %v1227, 1
        %v1386 = vrot.slane %v1230, 1
        %v1387 = vrot.slane %v1231, 1
        %v1388 = vrot.slane %v1234, 1
        %v1389 = vrot.slane %v1235, 1
        %v1390 = vrot.slane %v1238, 1
        %v1391 = vrot.slane %v1239, 1
        %v1392 = vrot.slane %v1242, 1
        %v1393 = vrot.slane %v1243, 1
        %v1394 = vrot.slane %v1246, 1
        %v1395 = vrot.slane %v1247, 1
        %v1396 = vrot.slane %v1250, 1
        %v1397 = vrot.slane %v1251, 1
        %v1398 = vrot.slane %v1254, 1
        %v1399 = vrot.slane %v1255, 1
        %v1400 = vsel %vm451, %v1364, %v1382
        %v1401 = vsel %vm451, %v1365, %v1383
        %v1402 = vsel %vm451, %v1366, %v1384
        %v1403 = vsel %vm451, %v1367, %v1385
        %v1404 = vsel %vm451, %v1368, %v1386
        %v1405 = vsel %vm451, %v1369, %v1387
        %v1406 = vsel %vm451, %v1370, %v1388
        %v1407 = vsel %vm451, %v1371, %v1389
        %v1408 = vsel %vm451, %v1372, %v1390
        %v1409 = vsel %vm451, %v1373, %v1391
        %v1410 = vsel %vm451, %v1374, %v1392
        %v1411 = vsel %vm451, %v1375, %v1393
        %v1412 = vsel %vm451, %v1376, %v1394
        %v1413 = vsel %vm451, %v1377, %v1395
        %v1414 = vsel %vm451, %v1378, %v1396
        %v1415 = vsel %vm451, %v1379, %v1397
        %v1416 = vsel %vm451, %v1380, %v1398
        %v1417 = vsel %vm451, %v1381, %v1399
        %v1418 = vsel %vm451, %v1382, %v1364
        %v1419 = vsel %vm451, %v1383, %v1365
        %v1420 = vsel %vm451, %v1384, %v1366
        %v1421 = vsel %vm451, %v1385, %v1367
        %v1422 = vsel %vm451, %v1386, %v1368
        %v1423 = vsel %vm451, %v1387, %v1369
        %v1424 = vsel %vm451, %v1388, %v1370
        %v1425 = vsel %vm451, %v1389, %v1371
        %v1426 = vsel %vm451, %v1390, %v1372
        %v1427 = vsel %vm451, %v1391, %v1373
        %v1428 = vsel %vm451, %v1392, %v1374
        %v1429 = vsel %vm451, %v1393, %v1375
        %v1430 = vsel %vm451, %v1394, %v1376
        %v1431 = vsel %vm451, %v1395, %v1377
        %v1432 = vsel %vm451, %v1396, %v1378
        %v1433 = vsel %vm451, %v1397, %v1379
        %v1434 = vsel %vm451, %v1398, %v1380
        %v1435 = vsel %vm451, %v1399, %v1381
        %v1436 = vsel %vm490, 0.0, %v1400
        %v1437 = vsel %vm490, 0.0, %v1401
        %v1438 = vsel %vm491, 0.0, %v1418
        %v1439 = vsel %vm491, 0.0, %v1419
        %v1440 = vsel %vm490, 0.0, %v1402
        %v1441 = vsel %vm490, 0.0, %v1403
        %v1442 = vsel %vm491, 0.0, %v1420
        %v1443 = vsel %vm491, 0.0, %v1421
        %v1444 = vsel %vm490, 0.0, %v1404
        %v1445 = vsel %vm490, 0.0, %v1405
        %v1446 = vsel %vm491, 0.0, %v1422
        %v1447 = vsel %vm491, 0.0, %v1423
        %v1448 = vsel %vm490, 0.0, %v1406
        %v1449 = vsel %vm490, 0.0, %v1407
        %v1450 = vsel %vm491, 0.0, %v1424
        %v1451 = vsel %vm491, 0.0, %v1425
        %v1452 = vsel %vm490, 0.0, %v1408
        %v1453 = vsel %vm490, 0.0, %v1409
        %v1454 = vsel %vm491, 0.0, %v1426
        %v1455 = vsel %vm491, 0.0, %v1427
        %v1456 = vsel %vm490, 0.0, %v1410
        %v1457 = vsel %vm490, 0.0, %v1411
        %v1458 = vsel %vm491, 0.0, %v1428
        %v1459 = vsel %vm491, 0.0, %v1429
        %v1460 = vsel %vm490, 0.0, %v1412
        %v1461 = vsel %vm490, 0.0, %v1413
        %v1462 = vsel %vm491, 0.0, %v1430
        %v1463 = vsel %vm491, 0.0, %v1431
        %v1464 = vsel %vm490, 0.0, %v1414
        %v1465 = vsel %vm490, 0.0, %v1415
        %v1466 = vsel %vm491, 0.0, %v1432
        %v1467 = vsel %vm491, 0.0, %v1433
        %v1468 = vsel %vm490, 0.0, %v1416
        %v1469 = vsel %vm490, 0.0, %v1417
        %v1470 = vsel %vm491, 0.0, %v1434
        %v1471 = vsel %vm491, 0.0, %v1435
        %v1472 = vmul.f32 %v1328, %v533
        %v1473 = vmul.f32 %v1329, %v537
        %v1474 = vmul.f32 %v1330, %v533
        %v1475 = vmul.f32 %v1331, %v537
        %v1476 = vmul.f32 %v1332, %v533
        %v1477 = vmul.f32 %v1333, %v537
        %v1478 = vmul.f32 %v1334, %v533
        %v1479 = vmul.f32 %v1335, %v537
        %v1480 = vmul.f32 %v1336, %v533
        %v1481 = vmul.f32 %v1337, %v537
        %v1482 = vmul.f32 %v1338, %v533
        %v1483 = vmul.f32 %v1339, %v537
        %v1484 = vmul.f32 %v1340, %v533
        %v1485 = vmul.f32 %v1341, %v537
        %v1486 = vmul.f32 %v1342, %v533
        %v1487 = vmul.f32 %v1343, %v537
        %v1488 = vmul.f32 %v1344, %v533
        %v1489 = vmul.f32 %v1345, %v537
        %v1490 = vmul.f32 %v1346, %v533
        %v1491 = vmul.f32 %v1347, %v537
        %v1492 = vmul.f32 %v1348, %v533
        %v1493 = vmul.f32 %v1349, %v537
        %v1494 = vmul.f32 %v1350, %v533
        %v1495 = vmul.f32 %v1351, %v537
        %v1496 = vmul.f32 %v1352, %v533
        %v1497 = vmul.f32 %v1353, %v537
        %v1498 = vmul.f32 %v1354, %v533
        %v1499 = vmul.f32 %v1355, %v537
        %v1500 = vmul.f32 %v1356, %v533
        %v1501 = vmul.f32 %v1357, %v537
        %v1502 = vmul.f32 %v1358, %v533
        %v1503 = vmul.f32 %v1359, %v537
        %v1504 = vmul.f32 %v1220, %v573
        %v1505 = vmul.f32 %v1221, %v577
        %v1506 = vmul.f32 %v1222, %v573
        %v1507 = vmul.f32 %v1223, %v577
        %v1508 = vmul.f32 %v1224, %v573
        %v1509 = vmul.f32 %v1225, %v577
        %v1510 = vmul.f32 %v1226, %v573
        %v1511 = vmul.f32 %v1227, %v577
        %v1512 = vmul.f32 %v1228, %v573
        %v1513 = vmul.f32 %v1229, %v577
        %v1514 = vmul.f32 %v1230, %v573
        %v1515 = vmul.f32 %v1231, %v577
        %v1516 = vmul.f32 %v1232, %v573
        %v1517 = vmul.f32 %v1233, %v577
        %v1518 = vmul.f32 %v1234, %v573
        %v1519 = vmul.f32 %v1235, %v577
        %v1520 = vmul.f32 %v1236, %v573
        %v1521 = vmul.f32 %v1237, %v577
        %v1522 = vmul.f32 %v1238, %v573
        %v1523 = vmul.f32 %v1239, %v577
        %v1524 = vmul.f32 %v1240, %v573
        %v1525 = vmul.f32 %v1241, %v577
        %v1526 = vmul.f32 %v1242, %v573
        %v1527 = vmul.f32 %v1243, %v577
        %v1528 = vmul.f32 %v1244, %v573
        %v1529 = vmul.f32 %v1245, %v577
        %v1530 = vmul.f32 %v1246, %v573
        %v1531 = vmul.f32 %v1247, %v577
        %v1532 = vmul.f32 %v1248, %v573
        %v1533 = vmul.f32 %v1249, %v577
        %v1534 = vmul.f32 %v1250, %v573
        %v1535 = vmul.f32 %v1251, %v577
        %v1536 = vadd.f32 %v1472, %v1504
        %v1537 = vadd.f32 %v1473, %v1505
        %v1538 = vadd.f32 %v1474, %v1506
        %v1539 = vadd.f32 %v1475, %v1507
        %v1540 = vadd.f32 %v1476, %v1508
        %v1541 = vadd.f32 %v1477, %v1509
        %v1542 = vadd.f32 %v1478, %v1510
        %v1543 = vadd.f32 %v1479, %v1511
        %v1544 = vadd.f32 %v1480, %v1512
        %v1545 = vadd.f32 %v1481, %v1513
        %v1546 = vadd.f32 %v1482, %v1514
        %v1547 = vadd.f32 %v1483, %v1515
        %v1548 = vadd.f32 %v1484, %v1516
        %v1549 = vadd.f32 %v1485, %v1517
        %v1550 = vadd.f32 %v1486, %v1518
        %v1551 = vadd.f32 %v1487, %v1519
        %v1552 = vadd.f32 %v1488, %v1520
        %v1553 = vadd.f32 %v1489, %v1521
        %v1554 = vadd.f32 %v1490, %v1522
        %v1555 = vadd.f32 %v1491, %v1523
        %v1556 = vadd.f32 %v1492, %v1524
        %v1557 = vadd.f32 %v1493, %v1525
        %v1558 = vadd.f32 %v1494, %v1526
        %v1559 = vadd.f32 %v1495, %v1527
        %v1560 = vadd.f32 %v1496, %v1528
        %v1561 = vadd.f32 %v1497, %v1529
        %v1562 = vadd.f32 %v1498, %v1530
        %v1563 = vadd.f32 %v1499, %v1531
        %v1564 = vadd.f32 %v1500, %v1532
        %v1565 = vadd.f32 %v1501, %v1533
        %v1566 = vadd.f32 %v1502, %v1534
        %v1567 = vadd.f32 %v1503, %v1535
        %v1568 = vmul.f32 %v1436, %v643
        %v1569 = vmul.f32 %v1437, %v647
        %v1570 = vmul.f32 %v1438, %v643
        %v1571 = vmul.f32 %v1439, %v647
        %v1572 = vmul.f32 %v1440, %v643
        %v1573 = vmul.f32 %v1441, %v647
        %v1574 = vmul.f32 %v1442, %v643
        %v1575 = vmul.f32 %v1443, %v647
        %v1576 = vmul.f32 %v1444, %v643
        %v1577 = vmul.f32 %v1445, %v647
        %v1578 = vmul.f32 %v1446, %v643
        %v1579 = vmul.f32 %v1447, %v647
        %v1580 = vmul.f32 %v1448, %v643
        %v1581 = vmul.f32 %v1449, %v647
        %v1582 = vmul.f32 %v1450, %v643
        %v1583 = vmul.f32 %v1451, %v647
        %v1584 = vmul.f32 %v1452, %v643
        %v1585 = vmul.f32 %v1453, %v647
        %v1586 = vmul.f32 %v1454, %v643
        %v1587 = vmul.f32 %v1455, %v647
        %v1588 = vmul.f32 %v1456, %v643
        %v1589 = vmul.f32 %v1457, %v647
        %v1590 = vmul.f32 %v1458, %v643
        %v1591 = vmul.f32 %v1459, %v647
        %v1592 = vmul.f32 %v1460, %v643
        %v1593 = vmul.f32 %v1461, %v647
        %v1594 = vmul.f32 %v1462, %v643
        %v1595 = vmul.f32 %v1463, %v647
        %v1596 = vmul.f32 %v1464, %v643
        %v1597 = vmul.f32 %v1465, %v647
        %v1598 = vmul.f32 %v1466, %v643
        %v1599 = vmul.f32 %v1467, %v647
        %v1600 = vadd.f32 %v1536, %v1568
        %v1601 = vadd.f32 %v1537, %v1569
        %v1602 = vadd.f32 %v1538, %v1570
        %v1603 = vadd.f32 %v1539, %v1571
        %v1604 = vadd.f32 %v1540, %v1572
        %v1605 = vadd.f32 %v1541, %v1573
        %v1606 = vadd.f32 %v1542, %v1574
        %v1607 = vadd.f32 %v1543, %v1575
        %v1608 = vadd.f32 %v1544, %v1576
        %v1609 = vadd.f32 %v1545, %v1577
        %v1610 = vadd.f32 %v1546, %v1578
        %v1611 = vadd.f32 %v1547, %v1579
        %v1612 = vadd.f32 %v1548, %v1580
        %v1613 = vadd.f32 %v1549, %v1581
        %v1614 = vadd.f32 %v1550, %v1582
        %v1615 = vadd.f32 %v1551, %v1583
        %v1616 = vadd.f32 %v1552, %v1584
        %v1617 = vadd.f32 %v1553, %v1585
        %v1618 = vadd.f32 %v1554, %v1586
        %v1619 = vadd.f32 %v1555, %v1587
        %v1620 = vadd.f32 %v1556, %v1588
        %v1621 = vadd.f32 %v1557, %v1589
        %v1622 = vadd.f32 %v1558, %v1590
        %v1623 = vadd.f32 %v1559, %v1591
        %v1624 = vadd.f32 %v1560, %v1592
        %v1625 = vadd.f32 %v1561, %v1593
        %v1626 = vadd.f32 %v1562, %v1594
        %v1627 = vadd.f32 %v1563, %v1595
        %v1628 = vadd.f32 %v1564, %v1596
        %v1629 = vadd.f32 %v1565, %v1597
        %v1630 = vadd.f32 %v1566, %v1598
        %v1631 = vadd.f32 %v1567, %v1599
        %v1632 = vmul.f32 %v1332, %v715
        %v1633 = vmul.f32 %v1333, %v719
        %v1634 = vmul.f32 %v1334, %v715
        %v1635 = vmul.f32 %v1335, %v719
        %v1636 = vmul.f32 %v1336, %v715
        %v1637 = vmul.f32 %v1337, %v719
        %v1638 = vmul.f32 %v1338, %v715
        %v1639 = vmul.f32 %v1339, %v719
        %v1640 = vmul.f32 %v1340, %v715
        %v1641 = vmul.f32 %v1341, %v719
        %v1642 = vmul.f32 %v1342, %v715
        %v1643 = vmul.f32 %v1343, %v719
        %v1644 = vmul.f32 %v1344, %v715
        %v1645 = vmul.f32 %v1345, %v719
        %v1646 = vmul.f32 %v1346, %v715
        %v1647 = vmul.f32 %v1347, %v719
        %v1648 = vmul.f32 %v1348, %v715
        %v1649 = vmul.f32 %v1349, %v719
        %v1650 = vmul.f32 %v1350, %v715
        %v1651 = vmul.f32 %v1351, %v719
        %v1652 = vmul.f32 %v1352, %v715
        %v1653 = vmul.f32 %v1353, %v719
        %v1654 = vmul.f32 %v1354, %v715
        %v1655 = vmul.f32 %v1355, %v719
        %v1656 = vmul.f32 %v1356, %v715
        %v1657 = vmul.f32 %v1357, %v719
        %v1658 = vmul.f32 %v1358, %v715
        %v1659 = vmul.f32 %v1359, %v719
        %v1660 = vmul.f32 %v1360, %v715
        %v1661 = vmul.f32 %v1361, %v719
        %v1662 = vmul.f32 %v1362, %v715
        %v1663 = vmul.f32 %v1363, %v719
        %v1664 = vadd.f32 %v1600, %v1632
        %v1665 = vadd.f32 %v1601, %v1633
        %v1666 = vadd.f32 %v1602, %v1634
        %v1667 = vadd.f32 %v1603, %v1635
        %v1668 = vadd.f32 %v1604, %v1636
        %v1669 = vadd.f32 %v1605, %v1637
        %v1670 = vadd.f32 %v1606, %v1638
        %v1671 = vadd.f32 %v1607, %v1639
        %v1672 = vadd.f32 %v1608, %v1640
        %v1673 = vadd.f32 %v1609, %v1641
        %v1674 = vadd.f32 %v1610, %v1642
        %v1675 = vadd.f32 %v1611, %v1643
        %v1676 = vadd.f32 %v1612, %v1644
        %v1677 = vadd.f32 %v1613, %v1645
        %v1678 = vadd.f32 %v1614, %v1646
        %v1679 = vadd.f32 %v1615, %v1647
        %v1680 = vadd.f32 %v1616, %v1648
        %v1681 = vadd.f32 %v1617, %v1649
        %v1682 = vadd.f32 %v1618, %v1650
        %v1683 = vadd.f32 %v1619, %v1651
        %v1684 = vadd.f32 %v1620, %v1652
        %v1685 = vadd.f32 %v1621, %v1653
        %v1686 = vadd.f32 %v1622, %v1654
        %v1687 = vadd.f32 %v1623, %v1655
        %v1688 = vadd.f32 %v1624, %v1656
        %v1689 = vadd.f32 %v1625, %v1657
        %v1690 = vadd.f32 %v1626, %v1658
        %v1691 = vadd.f32 %v1627, %v1659
        %v1692 = vadd.f32 %v1628, %v1660
        %v1693 = vadd.f32 %v1629, %v1661
        %v1694 = vadd.f32 %v1630, %v1662
        %v1695 = vadd.f32 %v1631, %v1663
        %v1696 = vmul.f32 %v1224, %v787
        %v1697 = vmul.f32 %v1225, %v791
        %v1698 = vmul.f32 %v1226, %v787
        %v1699 = vmul.f32 %v1227, %v791
        %v1700 = vmul.f32 %v1228, %v787
        %v1701 = vmul.f32 %v1229, %v791
        %v1702 = vmul.f32 %v1230, %v787
        %v1703 = vmul.f32 %v1231, %v791
        %v1704 = vmul.f32 %v1232, %v787
        %v1705 = vmul.f32 %v1233, %v791
        %v1706 = vmul.f32 %v1234, %v787
        %v1707 = vmul.f32 %v1235, %v791
        %v1708 = vmul.f32 %v1236, %v787
        %v1709 = vmul.f32 %v1237, %v791
        %v1710 = vmul.f32 %v1238, %v787
        %v1711 = vmul.f32 %v1239, %v791
        %v1712 = vmul.f32 %v1240, %v787
        %v1713 = vmul.f32 %v1241, %v791
        %v1714 = vmul.f32 %v1242, %v787
        %v1715 = vmul.f32 %v1243, %v791
        %v1716 = vmul.f32 %v1244, %v787
        %v1717 = vmul.f32 %v1245, %v791
        %v1718 = vmul.f32 %v1246, %v787
        %v1719 = vmul.f32 %v1247, %v791
        %v1720 = vmul.f32 %v1248, %v787
        %v1721 = vmul.f32 %v1249, %v791
        %v1722 = vmul.f32 %v1250, %v787
        %v1723 = vmul.f32 %v1251, %v791
        %v1724 = vmul.f32 %v1252, %v787
        %v1725 = vmul.f32 %v1253, %v791
        %v1726 = vmul.f32 %v1254, %v787
        %v1727 = vmul.f32 %v1255, %v791
        %v1728 = vadd.f32 %v1664, %v1696
        %v1729 = vadd.f32 %v1665, %v1697
        %v1730 = vadd.f32 %v1666, %v1698
        %v1731 = vadd.f32 %v1667, %v1699
        %v1732 = vadd.f32 %v1668, %v1700
        %v1733 = vadd.f32 %v1669, %v1701
        %v1734 = vadd.f32 %v1670, %v1702
        %v1735 = vadd.f32 %v1671, %v1703
        %v1736 = vadd.f32 %v1672, %v1704
        %v1737 = vadd.f32 %v1673, %v1705
        %v1738 = vadd.f32 %v1674, %v1706
        %v1739 = vadd.f32 %v1675, %v1707
        %v1740 = vadd.f32 %v1676, %v1708
        %v1741 = vadd.f32 %v1677, %v1709
        %v1742 = vadd.f32 %v1678, %v1710
        %v1743 = vadd.f32 %v1679, %v1711
        %v1744 = vadd.f32 %v1680, %v1712
        %v1745 = vadd.f32 %v1681, %v1713
        %v1746 = vadd.f32 %v1682, %v1714
        %v1747 = vadd.f32 %v1683, %v1715
        %v1748 = vadd.f32 %v1684, %v1716
        %v1749 = vadd.f32 %v1685, %v1717
        %v1750 = vadd.f32 %v1686, %v1718
        %v1751 = vadd.f32 %v1687, %v1719
        %v1752 = vadd.f32 %v1688, %v1720
        %v1753 = vadd.f32 %v1689, %v1721
        %v1754 = vadd.f32 %v1690, %v1722
        %v1755 = vadd.f32 %v1691, %v1723
        %v1756 = vadd.f32 %v1692, %v1724
        %v1757 = vadd.f32 %v1693, %v1725
        %v1758 = vadd.f32 %v1694, %v1726
        %v1759 = vadd.f32 %v1695, %v1727
        %v1760 = vmul.f32 %v1440, %v859
        %v1761 = vmul.f32 %v1441, %v863
        %v1762 = vmul.f32 %v1442, %v859
        %v1763 = vmul.f32 %v1443, %v863
        %v1764 = vmul.f32 %v1444, %v859
        %v1765 = vmul.f32 %v1445, %v863
        %v1766 = vmul.f32 %v1446, %v859
        %v1767 = vmul.f32 %v1447, %v863
        %v1768 = vmul.f32 %v1448, %v859
        %v1769 = vmul.f32 %v1449, %v863
        %v1770 = vmul.f32 %v1450, %v859
        %v1771 = vmul.f32 %v1451, %v863
        %v1772 = vmul.f32 %v1452, %v859
        %v1773 = vmul.f32 %v1453, %v863
        %v1774 = vmul.f32 %v1454, %v859
        %v1775 = vmul.f32 %v1455, %v863
        %v1776 = vmul.f32 %v1456, %v859
        %v1777 = vmul.f32 %v1457, %v863
        %v1778 = vmul.f32 %v1458, %v859
        %v1779 = vmul.f32 %v1459, %v863
        %v1780 = vmul.f32 %v1460, %v859
        %v1781 = vmul.f32 %v1461, %v863
        %v1782 = vmul.f32 %v1462, %v859
        %v1783 = vmul.f32 %v1463, %v863
        %v1784 = vmul.f32 %v1464, %v859
        %v1785 = vmul.f32 %v1465, %v863
        %v1786 = vmul.f32 %v1466, %v859
        %v1787 = vmul.f32 %v1467, %v863
        %v1788 = vmul.f32 %v1468, %v859
        %v1789 = vmul.f32 %v1469, %v863
        %v1790 = vmul.f32 %v1470, %v859
        %v1791 = vmul.f32 %v1471, %v863
        %v1792 = vadd.f32 %v1728, %v1760
        %v1793 = vadd.f32 %v1729, %v1761
        %v1794 = vadd.f32 %v1730, %v1762
        %v1795 = vadd.f32 %v1731, %v1763
        %v1796 = vadd.f32 %v1732, %v1764
        %v1797 = vadd.f32 %v1733, %v1765
        %v1798 = vadd.f32 %v1734, %v1766
        %v1799 = vadd.f32 %v1735, %v1767
        %v1800 = vadd.f32 %v1736, %v1768
        %v1801 = vadd.f32 %v1737, %v1769
        %v1802 = vadd.f32 %v1738, %v1770
        %v1803 = vadd.f32 %v1739, %v1771
        %v1804 = vadd.f32 %v1740, %v1772
        %v1805 = vadd.f32 %v1741, %v1773
        %v1806 = vadd.f32 %v1742, %v1774
        %v1807 = vadd.f32 %v1743, %v1775
        %v1808 = vadd.f32 %v1744, %v1776
        %v1809 = vadd.f32 %v1745, %v1777
        %v1810 = vadd.f32 %v1746, %v1778
        %v1811 = vadd.f32 %v1747, %v1779
        %v1812 = vadd.f32 %v1748, %v1780
        %v1813 = vadd.f32 %v1749, %v1781
        %v1814 = vadd.f32 %v1750, %v1782
        %v1815 = vadd.f32 %v1751, %v1783
        %v1816 = vadd.f32 %v1752, %v1784
        %v1817 = vadd.f32 %v1753, %v1785
        %v1818 = vadd.f32 %v1754, %v1786
        %v1819 = vadd.f32 %v1755, %v1787
        %v1820 = vadd.f32 %v1756, %v1788
        %v1821 = vadd.f32 %v1757, %v1789
        %v1822 = vadd.f32 %v1758, %v1790
        %v1823 = vadd.f32 %v1759, %v1791
        %v1824 = vmul.f32 %v1336, %v931
        %v1825 = vmul.f32 %v1337, %v935
        %v1826 = vmul.f32 %v1338, %v931
        %v1827 = vmul.f32 %v1339, %v935
        %v1828 = vmul.f32 %v1340, %v931
        %v1829 = vmul.f32 %v1341, %v935
        %v1830 = vmul.f32 %v1342, %v931
        %v1831 = vmul.f32 %v1343, %v935
        %v1832 = vmul.f32 %v1344, %v931
        %v1833 = vmul.f32 %v1345, %v935
        %v1834 = vmul.f32 %v1346, %v931
        %v1835 = vmul.f32 %v1347, %v935
        %v1836 = vmul.f32 %v1348, %v931
        %v1837 = vmul.f32 %v1349, %v935
        %v1838 = vmul.f32 %v1350, %v931
        %v1839 = vmul.f32 %v1351, %v935
        %v1840 = vmul.f32 %v1352, %v931
        %v1841 = vmul.f32 %v1353, %v935
        %v1842 = vmul.f32 %v1354, %v931
        %v1843 = vmul.f32 %v1355, %v935
        %v1844 = vmul.f32 %v1356, %v931
        %v1845 = vmul.f32 %v1357, %v935
        %v1846 = vmul.f32 %v1358, %v931
        %v1847 = vmul.f32 %v1359, %v935
        %v1848 = vmul.f32 %v1360, %v931
        %v1849 = vmul.f32 %v1361, %v935
        %v1850 = vmul.f32 %v1362, %v931
        %v1851 = vmul.f32 %v1363, %v935
        %v1852 = vmul.f32 %v377, %v931
        %v1853 = vmul.f32 %v377, %v935
        %v1854 = vmul.f32 %v378, %v931
        %v1855 = vmul.f32 %v378, %v935
        %v1856 = vadd.f32 %v1792, %v1824
        %v1857 = vadd.f32 %v1793, %v1825
        %v1858 = vadd.f32 %v1794, %v1826
        %v1859 = vadd.f32 %v1795, %v1827
        %v1860 = vadd.f32 %v1796, %v1828
        %v1861 = vadd.f32 %v1797, %v1829
        %v1862 = vadd.f32 %v1798, %v1830
        %v1863 = vadd.f32 %v1799, %v1831
        %v1864 = vadd.f32 %v1800, %v1832
        %v1865 = vadd.f32 %v1801, %v1833
        %v1866 = vadd.f32 %v1802, %v1834
        %v1867 = vadd.f32 %v1803, %v1835
        %v1868 = vadd.f32 %v1804, %v1836
        %v1869 = vadd.f32 %v1805, %v1837
        %v1870 = vadd.f32 %v1806, %v1838
        %v1871 = vadd.f32 %v1807, %v1839
        %v1872 = vadd.f32 %v1808, %v1840
        %v1873 = vadd.f32 %v1809, %v1841
        %v1874 = vadd.f32 %v1810, %v1842
        %v1875 = vadd.f32 %v1811, %v1843
        %v1876 = vadd.f32 %v1812, %v1844
        %v1877 = vadd.f32 %v1813, %v1845
        %v1878 = vadd.f32 %v1814, %v1846
        %v1879 = vadd.f32 %v1815, %v1847
        %v1880 = vadd.f32 %v1816, %v1848
        %v1881 = vadd.f32 %v1817, %v1849
        %v1882 = vadd.f32 %v1818, %v1850
        %v1883 = vadd.f32 %v1819, %v1851
        %v1884 = vadd.f32 %v1820, %v1852
        %v1885 = vadd.f32 %v1821, %v1853
        %v1886 = vadd.f32 %v1822, %v1854
        %v1887 = vadd.f32 %v1823, %v1855
        %v1888 = vmul.f32 %v1228, %v1003
        %v1889 = vmul.f32 %v1229, %v1007
        %v1890 = vmul.f32 %v1230, %v1003
        %v1891 = vmul.f32 %v1231, %v1007
        %v1892 = vmul.f32 %v1232, %v1003
        %v1893 = vmul.f32 %v1233, %v1007
        %v1894 = vmul.f32 %v1234, %v1003
        %v1895 = vmul.f32 %v1235, %v1007
        %v1896 = vmul.f32 %v1236, %v1003
        %v1897 = vmul.f32 %v1237, %v1007
        %v1898 = vmul.f32 %v1238, %v1003
        %v1899 = vmul.f32 %v1239, %v1007
        %v1900 = vmul.f32 %v1240, %v1003
        %v1901 = vmul.f32 %v1241, %v1007
        %v1902 = vmul.f32 %v1242, %v1003
        %v1903 = vmul.f32 %v1243, %v1007
        %v1904 = vmul.f32 %v1244, %v1003
        %v1905 = vmul.f32 %v1245, %v1007
        %v1906 = vmul.f32 %v1246, %v1003
        %v1907 = vmul.f32 %v1247, %v1007
        %v1908 = vmul.f32 %v1248, %v1003
        %v1909 = vmul.f32 %v1249, %v1007
        %v1910 = vmul.f32 %v1250, %v1003
        %v1911 = vmul.f32 %v1251, %v1007
        %v1912 = vmul.f32 %v1252, %v1003
        %v1913 = vmul.f32 %v1253, %v1007
        %v1914 = vmul.f32 %v1254, %v1003
        %v1915 = vmul.f32 %v1255, %v1007
        %v1916 = vmul.f32 %v1003, 0.0
        %v1917 = vmul.f32 %v1007, 0.0
        %v1918 = vadd.f32 %v1856, %v1888
        %v1919 = vadd.f32 %v1857, %v1889
        %v1920 = vadd.f32 %v1858, %v1890
        %v1921 = vadd.f32 %v1859, %v1891
        %v1922 = vadd.f32 %v1860, %v1892
        %v1923 = vadd.f32 %v1861, %v1893
        %v1924 = vadd.f32 %v1862, %v1894
        %v1925 = vadd.f32 %v1863, %v1895
        %v1926 = vadd.f32 %v1864, %v1896
        %v1927 = vadd.f32 %v1865, %v1897
        %v1928 = vadd.f32 %v1866, %v1898
        %v1929 = vadd.f32 %v1867, %v1899
        %v1930 = vadd.f32 %v1868, %v1900
        %v1931 = vadd.f32 %v1869, %v1901
        %v1932 = vadd.f32 %v1870, %v1902
        %v1933 = vadd.f32 %v1871, %v1903
        %v1934 = vadd.f32 %v1872, %v1904
        %v1935 = vadd.f32 %v1873, %v1905
        %v1936 = vadd.f32 %v1874, %v1906
        %v1937 = vadd.f32 %v1875, %v1907
        %v1938 = vadd.f32 %v1876, %v1908
        %v1939 = vadd.f32 %v1877, %v1909
        %v1940 = vadd.f32 %v1878, %v1910
        %v1941 = vadd.f32 %v1879, %v1911
        %v1942 = vadd.f32 %v1880, %v1912
        %v1943 = vadd.f32 %v1881, %v1913
        %v1944 = vadd.f32 %v1882, %v1914
        %v1945 = vadd.f32 %v1883, %v1915
        %v1946 = vadd.f32 %v1884, %v1916
        %v1947 = vadd.f32 %v1885, %v1917
        %v1948 = vadd.f32 %v1886, %v1916
        %v1949 = vadd.f32 %v1887, %v1917
        %v1950 = vmul.f32 %v1444, %v1075
        %v1951 = vmul.f32 %v1445, %v1079
        %v1952 = vmul.f32 %v1446, %v1075
        %v1953 = vmul.f32 %v1447, %v1079
        %v1954 = vmul.f32 %v1448, %v1075
        %v1955 = vmul.f32 %v1449, %v1079
        %v1956 = vmul.f32 %v1450, %v1075
        %v1957 = vmul.f32 %v1451, %v1079
        %v1958 = vmul.f32 %v1452, %v1075
        %v1959 = vmul.f32 %v1453, %v1079
        %v1960 = vmul.f32 %v1454, %v1075
        %v1961 = vmul.f32 %v1455, %v1079
        %v1962 = vmul.f32 %v1456, %v1075
        %v1963 = vmul.f32 %v1457, %v1079
        %v1964 = vmul.f32 %v1458, %v1075
        %v1965 = vmul.f32 %v1459, %v1079
        %v1966 = vmul.f32 %v1460, %v1075
        %v1967 = vmul.f32 %v1461, %v1079
        %v1968 = vmul.f32 %v1462, %v1075
        %v1969 = vmul.f32 %v1463, %v1079
        %v1970 = vmul.f32 %v1464, %v1075
        %v1971 = vmul.f32 %v1465, %v1079
        %v1972 = vmul.f32 %v1466, %v1075
        %v1973 = vmul.f32 %v1467, %v1079
        %v1974 = vmul.f32 %v1468, %v1075
        %v1975 = vmul.f32 %v1469, %v1079
        %v1976 = vmul.f32 %v1470, %v1075
        %v1977 = vmul.f32 %v1471, %v1079
        %v1978 = vmul.f32 %v492, %v1075
        %v1979 = vmul.f32 %v492, %v1079
        %v1980 = vmul.f32 %v493, %v1075
        %v1981 = vmul.f32 %v493, %v1079
        %v1982 = vadd.f32 %v1918, %v1950
        %v1983 = vadd.f32 %v1919, %v1951
        %v1984 = vadd.f32 %v1920, %v1952
        %v1985 = vadd.f32 %v1921, %v1953
        %v1986 = vadd.f32 %v1922, %v1954
        %v1987 = vadd.f32 %v1923, %v1955
        %v1988 = vadd.f32 %v1924, %v1956
        %v1989 = vadd.f32 %v1925, %v1957
        %v1990 = vadd.f32 %v1926, %v1958
        %v1991 = vadd.f32 %v1927, %v1959
        %v1992 = vadd.f32 %v1928, %v1960
        %v1993 = vadd.f32 %v1929, %v1961
        %v1994 = vadd.f32 %v1930, %v1962
        %v1995 = vadd.f32 %v1931, %v1963
        %v1996 = vadd.f32 %v1932, %v1964
        %v1997 = vadd.f32 %v1933, %v1965
        %v1998 = vadd.f32 %v1934, %v1966
        %v1999 = vadd.f32 %v1935, %v1967
        %v2000 = vadd.f32 %v1936, %v1968
        %v2001 = vadd.f32 %v1937, %v1969
        %v2002 = vadd.f32 %v1938, %v1970
        %v2003 = vadd.f32 %v1939, %v1971
        %v2004 = vadd.f32 %v1940, %v1972
        %v2005 = vadd.f32 %v1941, %v1973
        %v2006 = vadd.f32 %v1942, %v1974
        %v2007 = vadd.f32 %v1943, %v1975
        %v2008 = vadd.f32 %v1944, %v1976
        %v2009 = vadd.f32 %v1945, %v1977
        %v2010 = vadd.f32 %v1946, %v1978
        %v2011 = vadd.f32 %v1947, %v1979
        %v2012 = vadd.f32 %v1948, %v1980
        %v2013 = vadd.f32 %v1949, %v1981
        %v2014 = vadd.f32 %v1982, %v1148
        %v2015 = vadd.f32 %v1983, %v1152
        %v2016 = vadd.f32 %v1984, %v1148
        %v2017 = vadd.f32 %v1985, %v1152
        %v2018 = vadd.f32 %v1986, %v1148
        %v2019 = vadd.f32 %v1987, %v1152
        %v2020 = vadd.f32 %v1988, %v1148
        %v2021 = vadd.f32 %v1989, %v1152
        %v2022 = vadd.f32 %v1990, %v1148
        %v2023 = vadd.f32 %v1991, %v1152
        %v2024 = vadd.f32 %v1992, %v1148
        %v2025 = vadd.f32 %v1993, %v1152
        %v2026 = vadd.f32 %v1994, %v1148
        %v2027 = vadd.f32 %v1995, %v1152
        %v2028 = vadd.f32 %v1996, %v1148
        %v2029 = vadd.f32 %v1997, %v1152
        %v2030 = vadd.f32 %v1998, %v1148
        %v2031 = vadd.f32 %v1999, %v1152
        %v2032 = vadd.f32 %v2000, %v1148
        %v2033 = vadd.f32 %v2001, %v1152
        %v2034 = vadd.f32 %v2002, %v1148
        %v2035 = vadd.f32 %v2003, %v1152
        %v2036 = vadd.f32 %v2004, %v1148
        %v2037 = vadd.f32 %v2005, %v1152
        %v2038 = vadd.f32 %v2006, %v1148
        %v2039 = vadd.f32 %v2007, %v1152
        %v2040 = vadd.f32 %v2008, %v1148
        %v2041 = vadd.f32 %v2009, %v1152
        %v2042 = vadd.f32 %v2010, %v1148
        %v2043 = vadd.f32 %v2011, %v1152
        %v2044 = vadd.f32 %v2012, %v1148
        %v2045 = vadd.f32 %v2013, %v1152
        %s2046 = scalar_lea.vmem %s243, 256 [#allocation7]
        %2047 = vst [vmem:[%s2046] sm:$0xff] %v2014
        %2048 = vst [vmem:[%s2046 + $0x8] sm:$0xff] %v2015
        %2049 = vst [vmem:[%s2046 + $0x10] sm:$0xff] %v2016
        %2050 = vst [vmem:[%s2046 + $0x18] sm:$0xff] %v2017
        %2051 = vst [vmem:[%s2046 + $0x20] sm:$0xff] %v2018
        %2052 = vst [vmem:[%s2046 + $0x28] sm:$0xff] %v2019
        %2053 = vst [vmem:[%s2046 + $0x30] sm:$0xff] %v2020
        %2054 = vst [vmem:[%s2046 + $0x38] sm:$0xff] %v2021
        %2055 = vst [vmem:[%s2046 + $0x40] sm:$0xff] %v2022
        %2056 = vst [vmem:[%s2046 + $0x48] sm:$0xff] %v2023
        %2057 = vst [vmem:[%s2046 + $0x50] sm:$0xff] %v2024
        %2058 = vst [vmem:[%s2046 + $0x58] sm:$0xff] %v2025
        %2059 = vst [vmem:[%s2046 + $0x60] sm:$0xff] %v2026
        %2060 = vst [vmem:[%s2046 + $0x68] sm:$0xff] %v2027
        %2061 = vst [vmem:[%s2046 + $0x70] sm:$0xff] %v2028
        %2062 = vst [vmem:[%s2046 + $0x78] sm:$0xff] %v2029
        %2063 = vst [vmem:[%s2046 + $0x80] sm:$0xff] %v2030
        %2064 = vst [vmem:[%s2046 + $0x88] sm:$0xff] %v2031
        %2065 = vst [vmem:[%s2046 + $0x90] sm:$0xff] %v2032
        %2066 = vst [vmem:[%s2046 + $0x98] sm:$0xff] %v2033
        %2067 = vst [vmem:[%s2046 + $0xa0] sm:$0xff] %v2034
        %2068 = vst [vmem:[%s2046 + $0xa8] sm:$0xff] %v2035
        %2069 = vst [vmem:[%s2046 + $0xb0] sm:$0xff] %v2036
        %2070 = vst [vmem:[%s2046 + $0xb8] sm:$0xff] %v2037
        %2071 = vst [vmem:[%s2046 + $0xc0] sm:$0xff] %v2038
        %2072 = vst [vmem:[%s2046 + $0xc8] sm:$0xff] %v2039
        %2073 = vst [vmem:[%s2046 + $0xd0] sm:$0xff] %v2040
        %2074 = vst [vmem:[%s2046 + $0xd8] sm:$0xff] %v2041
        %2075 = vst [vmem:[%s2046 + $0xe0] sm:$0xff] %v2042
        %2076 = vst [vmem:[%s2046 + $0xe8] sm:$0xff] %v2043
        %2077 = vst [vmem:[%s2046 + $0xf0] sm:$0xff] %v2044
        %2078 = vst [vmem:[%s2046 + $0xf8] sm:$0xff] %v2045
        %s2079 = sand.u32 %s123, 1
        %s2080 = scalar_lea.sflag [#allocation4], %s2079
        %s2081 = sand.u32 %s123, 1
        %s2082 = smul.addr %s2081, 512
        %s2083 = scalar_lea.vmem [#allocation7], %s2082
        // Predicated region
        $region41: #{dwconv.1} parent=31 // pred_check
          %p2084 = pneg %p133
        $region42: #{dwconv.1} parent=31 // pred_check_branch
          %2086 = sbr.rel (%p2084) target = $region44
        $region43: #{dwconv.1} parent=31 // pred_region
          %s2087 = smul.u32 2, %s26
          %s2089 = ssub.s32 8192, 8192
          %2090 = vsyncadd %s2080, %s2089
          %s2091 = smul.addr %s25, 64
          %s2092 = sadd.s32 %s2087, %s2091
          %s2093 = smul.addr %s2092, 128
          %s2094 = scalar_lea.hbm %s3, %s2093
          %s2095 = sshll.u32 %s2083, 4
          %s2096 = int_to_ptr.vmem [resolvable:$true] %s2095
          %2101 = dma.vmem_to_hbm [thread:$0]  %s2096, 8192, %s2094, %s2080, 256, 256, 16
        $region44: #{dwconv.1} parent=31 // pred_fallthru
          _
      $region32: #{dwconv.1} parent=5 // pred_fallthru
        _
      %p2102 = scmp.le.s32.totalorder 2, %s16
      // Predicated region
      $region45: #{dwconv.1} parent=5 // pred_check
        %p2103 = pneg %p2102
      $region46: #{dwconv.1} parent=5 // pred_check_branch
        %2105 = sbr.rel (%p2103) target = $region48
      $region47: #{dwconv.1} parent=5 // pred_region
        %s2106 = ssub.s32 %s16, 2
        // Predicated region
        $region49: #{dwconv.1} parent=47 // pred_check
          %p2107 = pneg %p139
        $region50: #{dwconv.1} parent=47 // pred_check_branch
          %2109 = sbr.rel (%p2107) target = $region52
        $region51: #{dwconv.1} parent=47 // pred_region
          %s2110 = sand.u32 %s124, 1
          %s2111 = scalar_lea.sflag [#allocation4], %s2110
          %s2112 = sand.u32 %s124, 1
          %s2113 = smul.addr %s2112, 512
          %s2114 = scalar_lea.vmem [#allocation7], %s2113
          %2115 = dma.done %s2111, 8192
        $region52: #{dwconv.1} parent=47 // pred_fallthru
          _
      $region48: #{dwconv.1} parent=5 // pred_fallthru
        _
    $region6: #{dwconv.1} parent=1 // loop_footer
      %s20 = sadd.s32 1, %s16
    $region7: #{dwconv.1} parent=1 // loop_footer_branch
      %15 = sbr.rel target = $region3
    $region8: #{dwconv.1} parent=1 // loop_exit
      _
    %2116 = vsyncpa [#allocation3], 1
    %s2117 = scalar_lea.sflag [#allocation3], 1
    %2118 = vsyncpa %s2117, 1
    %2119 = vsyncpa [#allocation6], 1
    %2120 = vsyncpa [#allocation4], 1
    %s2121 = scalar_lea.sflag [#allocation4], 1
    %2122 = vsyncpa %s2121, 1

</llo_original>
